<compile_context>
chip_gen: v7x
topology: tpu7x:2x2x1
jax: 0.10.0
libtpu: 0.0.40
codegen_flags: <defaults>
</compile_context>

<pallas_src>
import functools
import math

import jax
import jax.numpy as jnp
import numpy as np
from jax.experimental import pallas as pl
from jax.experimental.pallas import tpu as pltpu

MATMUL_DTYPE = jnp.bfloat16   # MXU operand dtype (accumulation is always f32)
ACT_DTYPE = jnp.bfloat16      # inter-stage activations kept in VMEM as bf16


def _vmem_limit_bytes():
    # Half of physical VMEM, capped at 64 MiB (v5e/v6e: 128 MiB phys, v7x: 64 MiB).
    try:
        cap = int(pltpu.get_tpu_info().vmem_capacity_bytes)
    except Exception:
        cap = 64 << 20
    return max(16 << 20, min(cap // 2, 64 << 20))


# -----------------------------------------------------------------------------
# GELU (erf form, matching torch.nn.GELU()).  Abramowitz & Stegun 7.1.26 erf
# polynomial (|err| ~ 1.5e-7); the divide goes through pl.reciprocal(approx=True).
# -----------------------------------------------------------------------------
def _erf(x):
    a1, a2, a3, a4, a5 = 0.254829592, -0.284496736, 1.421413741, -1.453152027, 1.061405429
    p = 0.3275911
    s = jnp.where(x < 0.0, -1.0, 1.0)
    ax = jnp.abs(x)
    t = pl.reciprocal(1.0 + p * ax, approx=True)
    poly = ((((a5 * t + a4) * t + a3) * t + a2) * t + a1) * t
    return s * (1.0 - poly * jnp.exp(-ax * ax))


def _gelu(x):
    return 0.5 * x * (1.0 + _erf(x * (1.0 / math.sqrt(2.0))))


# -----------------------------------------------------------------------------
# Fused kernel: one batch element per grid step.
# -----------------------------------------------------------------------------
def _patch_embed_kernel(x_ref, w1_ref, w2_ref, w3_ref, b1_ref, b2_ref, b3_ref,
                        o_ref, x1_ref, a1_ref, a2_ref, *,
                        pad1, kh1, oh1, kh2, oh2, s2, p2, kh3, oh3, s3, p3,
                        ow3, d_model):
    f32 = jnp.float32
    cin, h, w = x_ref.shape[1], x_ref.shape[2], x_ref.shape[3]
    wp = w + 2 * pad1

    # ---- stage-1 input slab: NCHW block -> zero-padded (Hp, Cin*Wp) bf16 in VMEM ----
    x1_ref[...] = jnp.zeros_like(x1_ref)
    for c in range(cin):
        x1_ref[pad1:pad1 + h, c * wp + pad1:c * wp + pad1 + w] = (
            x_ref[0, c, :, :].astype(x1_ref.dtype))
    # zero-init the row-phase-split inter-stage slabs (their padding rows stay 0)
    a1_ref[...] = jnp.zeros_like(a1_ref)
    a2_ref[...] = jnp.zeros_like(a2_ref)

    # ---- conv1 (k5, s1, p2) + GELU : kh1 row-shifted GEMMs, K = Cin*Wp ----
    n1 = w1_ref.shape[2]
    acc = jnp.zeros((oh1, n1), f32)
    for ti in range(kh1):
        acc += jnp.dot(x1_ref[ti:ti + oh1, :], w1_ref[ti],
                       preferred_element_type=f32)
    act = _gelu(acc + b1_ref[...]).astype(a1_ref.dtype)
    for y in range(oh1):                      # scatter rows into stride-s2 phase planes
        q = y + p2
        a1_ref[q % s2, q // s2:q // s2 + 1, :] = act[y:y + 1, :]

    # ---- conv2 (k3, s2, p1) + GELU ----
    n2 = w2_ref.shape[2]
    acc = jnp.zeros((oh2, n2), f32)
    for ti in range(kh2):
        acc += jnp.dot(a1_ref[ti % s2, ti // s2:ti // s2 + oh2, :], w2_ref[ti],
                       preferred_element_type=f32)
    act = _gelu(acc + b2_ref[...]).astype(a2_ref.dtype)
    for y in range(oh2):                      # scatter rows into stride-s3 phase planes
        q = y + p3
        a2_ref[q % s3, q // s3:q // s3 + 1, :] = act[y:y + 1, :]

    # ---- conv3 (k=patch, s=patch//2, p=0), no activation ----
    n3 = w3_ref.shape[2]
    acc = jnp.zeros((oh3, n3), f32)
    for ti in range(kh3):
        acc += jnp.dot(a2_ref[ti % s3, ti // s3:ti // s3 + oh3, :], w3_ref[ti],
                       preferred_element_type=f32)
    acc = (acc + b3_ref[...]).astype(o_ref.dtype)

    # ---- flatten(2).transpose(1, 2):  (r, s*dm) -> (seq = r*ow3 + s, dm) ----
    for r in range(oh3):
        for s in range(ow3):
            o_ref[:, r * ow3 + s, :] = acc[r:r + 1, s * d_model:(s + 1) * d_model]


# -----------------------------------------------------------------------------
# One-time weight folding (host-side): conv weight -> per-tap-row GEMM matrices.
# -----------------------------------------------------------------------------
def _pack_rowgemm_weight(w_conv, slab_w, out_w, stride, w_off, channel_major_rows):
    """(C_out, C_in, kh, kw) -> (kh, slab_w*C_in, out_w*C_out).
    Row index is c*slab_w + w (channel_major_rows=True) or w*C_in + c; column index is
    x*C_out + co.  Width stride / padding are folded in via zero columns."""
    c_out, c_in, kh, kw = w_conv.shape
    if channel_major_rows:
        m = np.zeros((kh, c_in, slab_w, out_w, c_out), np.float32)
    else:
        m = np.zeros((kh, slab_w, c_in, out_w, c_out), np.float32)
    for ti in range(kh):
        for tj in range(kw):
            for x in range(out_w):
                w_idx = x * stride + tj - w_off
                if 0 <= w_idx < slab_w:
                    if channel_major_rows:
                        m[ti, :, w_idx, x, :] = w_conv[:, :, ti, tj].T
                    else:
                        m[ti, w_idx, :, x, :] = w_conv[:, :, ti, tj].T
    return m.reshape(kh, slab_w * c_in, out_w * c_out)


def make_patch_embedding(params, img_size, patch_size):
    """Returns a jitted forward(x) implementing the PatchEmbedding module as a single
    fused Pallas TPU kernel.  Weight folding happens once here, not per call."""
    h, w = img_size
    w1 = np.asarray(params["w1"], np.float32); b1 = np.asarray(params["b1"], np.float32)
    w2 = np.asarray(params["w2"], np.float32); b2 = np.asarray(params["b2"], np.float32)
    w3 = np.asarray(params["w3"], np.float32); b3 = np.asarray(params["b3"], np.float32)

    c1, cin, kh1, kw1 = w1.shape
    c2, _, kh2, kw2 = w2.shape
    d_model, _, kh3, kw3 = w3.shape
    assert kh3 == patch_size[0] and kw3 == patch_size[1]

    p1, st1 = 2, 1
    p2, st2 = 1, 2
    p3, st3 = 0, patch_size[0] // 2

    oh1 = (h + 2 * p1 - kh1) // st1 + 1; ow1 = (w + 2 * p1 - kw1) // st1 + 1
    oh2 = (oh1 + 2 * p2 - kh2) // st2 + 1; ow2 = (ow1 + 2 * p2 - kw2) // st2 + 1
    oh3 = (oh2 + 2 * p3 - kh3) // st3 + 1; ow3 = (ow2 + 2 * p3 - kw3) // st3 + 1
    seq = oh3 * ow3
    hp, wp = h + 2 * p1, w + 2 * p1

    # row-phase-split slab geometry for the strided stages
    l2 = (oh1 + 2 * p2 + st2 - 1) // st2
    l3 = (oh2 + 2 * p3 + st3 - 1) // st3
    assert (kh2 - 1) // st2 + oh2 <= l2 and (kh3 - 1) // st3 + oh3 <= l3

    n1, n2, n3 = ow1 * c1, ow2 * c2, ow3 * d_model

    # one-time weight folding (outside the jitted forward)
    w1p = jnp.asarray(_pack_rowgemm_weight(w1, wp, ow1, st1, 0, True), MATMUL_DTYPE)
    w2p = jnp.asarray(_pack_rowgemm_weight(w2, ow1, ow2, st2, p2, False), MATMUL_DTYPE)
    w3p = jnp.asarray(_pack_rowgemm_weight(w3, ow2, ow3, st3, p3, False), MATMUL_DTYPE)
    b1p = jnp.asarray(np.tile(b1, ow1)[None, :], jnp.float32)
    b2p = jnp.asarray(np.tile(b2, ow2)[None, :], jnp.float32)
    b3p = jnp.asarray(np.tile(b3, ow3)[None, :], jnp.float32)

    kernel = functools.partial(
        _patch_embed_kernel,
        pad1=p1, kh1=kh1, oh1=oh1, kh2=kh2, oh2=oh2, s2=st2, p2=p2,
        kh3=kh3, oh3=oh3, s3=st3, p3=p3, ow3=ow3, d_model=d_model)

    def forward(x):
        batch = x.shape[0]
        flops = 2 * batch * (kh1 * oh1 * (wp * cin) * n1
                             + kh2 * oh2 * n1 * n2
                             + kh3 * oh3 * n2 * n3)
        bytes_accessed = int(x.size * x.dtype.itemsize
                             + (w1p.size + w2p.size + w3p.size) * 2
                             + (b1p.size + b2p.size + b3p.size) * 4
                             + batch * seq * d_model * 4)
        return pl.pallas_call(
            kernel,
            out_shape=jax.ShapeDtypeStruct((batch, seq, d_model), jnp.float32),
            grid_spec=pltpu.PrefetchScalarGridSpec(
                num_scalar_prefetch=0,
                grid=(batch,),
                in_specs=[
                    pl.BlockSpec((1, cin, h, w), lambda b: (b, 0, 0, 0)),
                    pl.BlockSpec(w1p.shape, lambda b: (0, 0, 0)),   # pinned weights
                    pl.BlockSpec(w2p.shape, lambda b: (0, 0, 0)),   # pinned
                    pl.BlockSpec(w3p.shape, lambda b: (0, 0, 0)),   # pinned
                    pl.BlockSpec((1, n1), lambda b: (0, 0)),        # pinned biases
                    pl.BlockSpec((1, n2), lambda b: (0, 0)),
                    pl.BlockSpec((1, n3), lambda b: (0, 0)),
                ],
                out_specs=pl.BlockSpec((1, seq, d_model), lambda b: (b, 0, 0)),
                scratch_shapes=[
                    pltpu.VMEM((hp, cin * wp), MATMUL_DTYPE),   # padded conv1 input slab
                    pltpu.VMEM((st2, l2, n1), ACT_DTYPE),       # conv1 out, row-phase planes
                    pltpu.VMEM((st3, l3, n2), ACT_DTYPE),       # conv2 out, row-phase planes
                ],
            ),
            compiler_params=pltpu.CompilerParams(
                dimension_semantics=("parallel",),
                vmem_limit_bytes=_vmem_limit_bytes()),
            cost_estimate=pl.CostEstimate(
                flops=flops,
                transcendentals=batch * (oh1 * n1 + oh2 * n2),
                bytes_accessed=bytes_accessed),
        )(x, w1p, w2p, w3p, b1p, b2p, b3p)

    return jax.jit(forward)


# -----------------------------------------------------------------------------
# Parameter init (PyTorch Conv2d default: U(-1/sqrt(fan_in), 1/sqrt(fan_in)))
# and a plain-XLA f32 reference for a numerical sanity check.
# -----------------------------------------------------------------------------
def init_params(key, d_model, n_channels, patch_size):
    ks = jax.random.split(key, 6)

    def winit(k, shape):
        fan_in = shape[1] * shape[2] * shape[3]
        bound = 1.0 / math.sqrt(fan_in)
        return jax.random.uniform(k, shape, jnp.float32, -bound, bound)

    def binit(k, c_out, fan_in):
        bound = 1.0 / math.sqrt(fan_in)
        return jax.random.uniform(k, (c_out,), jnp.float32, -bound, bound)

    p = patch_size[0]
    return {
        "w1": winit(ks[0], (8, n_channels, 5, 5)),
        "b1": binit(ks[1], 8, n_channels * 5 * 5),
        "w2": winit(ks[2], (16, 8, 3, 3)),
        "b2": binit(ks[3], 16, 8 * 3 * 3),
        "w3": winit(ks[4], (d_model, 16, p, p)),
        "b3": binit(ks[5], d_model, 16 * p * p),
    }


def _reference_forward(x, params, patch_size):
    def conv(y, wt, bias, stride, pad):
        y = jax.lax.conv_general_dilated(
            y, wt, window_strides=(stride, stride),
            padding=((pad, pad), (pad, pad)),
            dimension_numbers=("NCHW", "OIHW", "NCHW"))
        return y + bias[None, :, None, None]

    y = jax.nn.gelu(conv(x, params["w1"], params["b1"], 1, 2), approximate=False)
    y = jax.nn.gelu(conv(y, params["w2"], params["b2"], 2, 1), approximate=False)
    y = conv(y, params["w3"], params["b3"], patch_size[0] // 2, 0)
    b_, c_, h_, w_ = y.shape
    return y.reshape(b_, c_, h_ * w_).transpose(0, 2, 1)


if __name__ == "__main__":
    d_model = 32
    img_size = (16, 16)
    patch_size = (4, 4)
    n_channels = 4
    batch = 2

    key = jax.random.PRNGKey(0)
    k_x, k_p = jax.random.split(key)
    x = jax.random.normal(k_x, (batch, n_channels, *img_size), dtype=jnp.float32)
    params = init_params(k_p, d_model, n_channels, patch_size)

    fwd = make_patch_embedding(params, img_size, patch_size)
    out = fwd(x)
    jax.block_until_ready(out)

    # 16 -> conv1(k5,s1,p2) 16 -> conv2(k3,s2,p1) 8 -> conv3(k4,s2) 3  =>  seq = 9
    assert out.shape == (batch, 9, d_model), out.shape

    ref = _reference_forward(x, params, patch_size)
    err = float(jnp.max(jnp.abs(out.astype(jnp.float32) - ref)))
    assert err < 5e-2, f"max abs error vs reference: {err}"   # bf16-operand tolerance
    print("KERNEL_OK")
</pallas_src>

<mosaic_0001>
module attributes {stable_mosaic.version = 11 : i64} {
  func.func @_patch_embed_kernel(%arg0: i32, %arg1: memref<1x4x16x16xf32, #tpu.memory_space<vmem>>, %arg2: memref<5x80x128xbf16, #tpu.memory_space<vmem>>, %arg3: memref<3x128x128xbf16, #tpu.memory_space<vmem>>, %arg4: memref<4x128x96xbf16, #tpu.memory_space<vmem>>, %arg5: memref<1x128xf32, #tpu.memory_space<vmem>>, %arg6: memref<1x128xf32, #tpu.memory_space<vmem>>, %arg7: memref<1x96xf32, #tpu.memory_space<vmem>>, %arg8: memref<1x9x32xf32, #tpu.memory_space<vmem>>, %arg9: memref<20x80xbf16, #tpu.memory_space<vmem>>, %arg10: memref<2x9x128xbf16, #tpu.memory_space<vmem>>, %arg11: memref<2x4x128xbf16, #tpu.memory_space<vmem>>) attributes {dimension_semantics = [#tpu.dimension_semantics<parallel>], iteration_bounds = array<i64: 2>, scalar_prefetch = 0 : i64, scratch_operands = 3 : i64, tpu.core_type = #tpu.core_type<tc>, window_params = [{transform_indices = @transform_0, window_bounds = array<i64: 1, 4, 16, 16>}, {pipeline_mode = #tpu.pipeline_mode<synchronous>, transform_indices = @transform_1, window_bounds = array<i64: 5, 80, 128>}, {pipeline_mode = #tpu.pipeline_mode<synchronous>, transform_indices = @transform_2, window_bounds = array<i64: 3, 128, 128>}, {pipeline_mode = #tpu.pipeline_mode<synchronous>, transform_indices = @transform_3, window_bounds = array<i64: 4, 128, 96>}, {pipeline_mode = #tpu.pipeline_mode<synchronous>, transform_indices = @transform_4, window_bounds = array<i64: 1, 128>}, {pipeline_mode = #tpu.pipeline_mode<synchronous>, transform_indices = @transform_5, window_bounds = array<i64: 1, 128>}, {pipeline_mode = #tpu.pipeline_mode<synchronous>, transform_indices = @transform_6, window_bounds = array<i64: 1, 96>}, {transform_indices = @transform_7, window_bounds = array<i64: 1, 9, 32>}]} {
    %cst = arith.constant 0.000000e+00 : bf16
    %0 = vector.broadcast %cst : bf16 to vector<20x80xbf16>
    %c0 = arith.constant 0 : index
    %c0_0 = arith.constant 0 : index
    %1 = vector.load %arg9[%c0, %c0_0] : memref<20x80xbf16, #tpu.memory_space<vmem>>, vector<20x80xbf16>
    tpu.vector_store %arg9[%c0, %c0_0], %0 {strides = array<i32>} : memref<20x80xbf16, #tpu.memory_space<vmem>>, vector<20x80xbf16>,
    %c0_1 = arith.constant 0 : index
    %c0_2 = arith.constant 0 : index
    %c0_3 = arith.constant 0 : index
    %c0_4 = arith.constant 0 : index
    %2 = vector.load %arg1[%c0_1, %c0_2, %c0_3, %c0_4] : memref<1x4x16x16xf32, #tpu.memory_space<vmem>>, vector<1x1x16x16xf32>
    %3 = vector.shape_cast %2 : vector<1x1x16x16xf32> to vector<16x16xf32>
    %4 = arith.truncf %3 : vector<16x16xf32> to vector<16x16xbf16>
    %c2 = arith.constant 2 : index
    %c2_5 = arith.constant 2 : index
    %5 = vector.load %arg9[%c2, %c2_5] : memref<20x80xbf16, #tpu.memory_space<vmem>>, vector<16x16xbf16>
    tpu.vector_store %arg9[%c2, %c2_5], %4 {strides = array<i32>} : memref<20x80xbf16, #tpu.memory_space<vmem>>, vector<16x16xbf16>,
    %c0_6 = arith.constant 0 : index
    %c1 = arith.constant 1 : index
    %c0_7 = arith.constant 0 : index
    %c0_8 = arith.constant 0 : index
    %6 = vector.load %arg1[%c0_6, %c1, %c0_7, %c0_8] : memref<1x4x16x16xf32, #tpu.memory_space<vmem>>, vector<1x1x16x16xf32>
    %7 = vector.shape_cast %6 : vector<1x1x16x16xf32> to vector<16x16xf32>
    %8 = arith.truncf %7 : vector<16x16xf32> to vector<16x16xbf16>
    %c2_9 = arith.constant 2 : index
    %c22 = arith.constant 22 : index
    %9 = vector.load %arg9[%c2_9, %c22] : memref<20x80xbf16, #tpu.memory_space<vmem>>, vector<16x16xbf16>
    tpu.vector_store %arg9[%c2_9, %c22], %8 {strides = array<i32>} : memref<20x80xbf16, #tpu.memory_space<vmem>>, vector<16x16xbf16>,
    %c0_10 = arith.constant 0 : index
    %c2_11 = arith.constant 2 : index
    %c0_12 = arith.constant 0 : index
    %c0_13 = arith.constant 0 : index
    %10 = vector.load %arg1[%c0_10, %c2_11, %c0_12, %c0_13] : memref<1x4x16x16xf32, #tpu.memory_space<vmem>>, vector<1x1x16x16xf32>
    %11 = vector.shape_cast %10 : vector<1x1x16x16xf32> to vector<16x16xf32>
    %12 = arith.truncf %11 : vector<16x16xf32> to vector<16x16xbf16>
    %c2_14 = arith.constant 2 : index
    %c42 = arith.constant 42 : index
    %13 = vector.load %arg9[%c2_14, %c42] : memref<20x80xbf16, #tpu.memory_space<vmem>>, vector<16x16xbf16>
    tpu.vector_store %arg9[%c2_14, %c42], %12 {strides = array<i32>} : memref<20x80xbf16, #tpu.memory_space<vmem>>, vector<16x16xbf16>,
    %c0_15 = arith.constant 0 : index
    %c3 = arith.constant 3 : index
    %c0_16 = arith.constant 0 : index
    %c0_17 = arith.constant 0 : index
    %14 = vector.load %arg1[%c0_15, %c3, %c0_16, %c0_17] : memref<1x4x16x16xf32, #tpu.memory_space<vmem>>, vector<1x1x16x16xf32>
    %15 = vector.shape_cast %14 : vector<1x1x16x16xf32> to vector<16x16xf32>
    %16 = arith.truncf %15 : vector<16x16xf32> to vector<16x16xbf16>
    %c2_18 = arith.constant 2 : index
    %c62 = arith.constant 62 : index
    %17 = vector.load %arg9[%c2_18, %c62] : memref<20x80xbf16, #tpu.memory_space<vmem>>, vector<16x16xbf16>
    tpu.vector_store %arg9[%c2_18, %c62], %16 {strides = array<i32>} : memref<20x80xbf16, #tpu.memory_space<vmem>>, vector<16x16xbf16>,
    %cst_19 = arith.constant 0.000000e+00 : bf16
    %18 = vector.broadcast %cst_19 : bf16 to vector<2x9x128xbf16>
    %c0_20 = arith.constant 0 : index
    %c0_21 = arith.constant 0 : index
    %c0_22 = arith.constant 0 : index
    %19 = vector.load %arg10[%c0_20, %c0_21, %c0_22] : memref<2x9x128xbf16, #tpu.memory_space<vmem>>, vector<2x9x128xbf16>
    tpu.vector_store %arg10[%c0_20, %c0_21, %c0_22], %18 {strides = array<i32>} : memref<2x9x128xbf16, #tpu.memory_space<vmem>>, vector<2x9x128xbf16>,
    %cst_23 = arith.constant 0.000000e+00 : bf16
    %20 = vector.broadcast %cst_23 : bf16 to vector<2x4x128xbf16>
    %c0_24 = arith.constant 0 : index
    %c0_25 = arith.constant 0 : index
    %c0_26 = arith.constant 0 : index
    %21 = vector.load %arg11[%c0_24, %c0_25, %c0_26] : memref<2x4x128xbf16, #tpu.memory_space<vmem>>, vector<2x4x128xbf16>
    tpu.vector_store %arg11[%c0_24, %c0_25, %c0_26], %20 {strides = array<i32>} : memref<2x4x128xbf16, #tpu.memory_space<vmem>>, vector<2x4x128xbf16>,
    %cst_27 = arith.constant 0.000000e+00 : f32
    %22 = vector.broadcast %cst_27 : f32 to vector<16x128xf32>
    %c0_28 = arith.constant 0 : index
    %c0_29 = arith.constant 0 : index
    %23 = vector.load %arg9[%c0_28, %c0_29] : memref<20x80xbf16, #tpu.memory_space<vmem>>, vector<16x80xbf16>
    %c0_30 = arith.constant 0 : index
    %c0_31 = arith.constant 0 : index
    %c0_32 = arith.constant 0 : index
    %24 = vector.load %arg2[%c0_30, %c0_31, %c0_32] : memref<5x80x128xbf16, #tpu.memory_space<vmem>>, vector<1x80x128xbf16>
    %25 = vector.shape_cast %24 : vector<1x80x128xbf16> to vector<80x128xbf16>
    %cst_33 = arith.constant dense<0.000000e+00> : vector<16x128xf32>
    %26 = tpu.matmul %23, %25, %cst_33 {dimension_numbers = #tpu.dot_dimension_numbers<[1], [0], [0], [1], [0, 0, 1, 1], [], []>} : vector<16x80xbf16>, vector<80x128xbf16>, vector<16x128xf32> -> vector<16x128xf32>
    %27 = arith.addf %22, %26 : vector<16x128xf32>
    %c1_34 = arith.constant 1 : index
    %c0_35 = arith.constant 0 : index
    %28 = vector.load %arg9[%c1_34, %c0_35] : memref<20x80xbf16, #tpu.memory_space<vmem>>, vector<16x80xbf16>
    %c1_36 = arith.constant 1 : index
    %c0_37 = arith.constant 0 : index
    %c0_38 = arith.constant 0 : index
    %29 = vector.load %arg2[%c1_36, %c0_37, %c0_38] : memref<5x80x128xbf16, #tpu.memory_space<vmem>>, vector<1x80x128xbf16>
    %30 = vector.shape_cast %29 : vector<1x80x128xbf16> to vector<80x128xbf16>
    %cst_39 = arith.constant dense<0.000000e+00> : vector<16x128xf32>
    %31 = tpu.matmul %28, %30, %cst_39 {dimension_numbers = #tpu.dot_dimension_numbers<[1], [0], [0], [1], [0, 0, 1, 1], [], []>} : vector<16x80xbf16>, vector<80x128xbf16>, vector<16x128xf32> -> vector<16x128xf32>
    %32 = arith.addf %27, %31 : vector<16x128xf32>
    %c2_40 = arith.constant 2 : index
    %c0_41 = arith.constant 0 : index
    %33 = vector.load %arg9[%c2_40, %c0_41] : memref<20x80xbf16, #tpu.memory_space<vmem>>, vector<16x80xbf16>
    %c2_42 = arith.constant 2 : index
    %c0_43 = arith.constant 0 : index
    %c0_44 = arith.constant 0 : index
    %34 = vector.load %arg2[%c2_42, %c0_43, %c0_44] : memref<5x80x128xbf16, #tpu.memory_space<vmem>>, vector<1x80x128xbf16>
    %35 = vector.shape_cast %34 : vector<1x80x128xbf16> to vector<80x128xbf16>
    %cst_45 = arith.constant dense<0.000000e+00> : vector<16x128xf32>
    %36 = tpu.matmul %33, %35, %cst_45 {dimension_numbers = #tpu.dot_dimension_numbers<[1], [0], [0], [1], [0, 0, 1, 1], [], []>} : vector<16x80xbf16>, vector<80x128xbf16>, vector<16x128xf32> -> vector<16x128xf32>
    %37 = arith.addf %32, %36 : vector<16x128xf32>
    %c3_46 = arith.constant 3 : index
    %c0_47 = arith.constant 0 : index
    %38 = vector.load %arg9[%c3_46, %c0_47] : memref<20x80xbf16, #tpu.memory_space<vmem>>, vector<16x80xbf16>
    %c3_48 = arith.constant 3 : index
    %c0_49 = arith.constant 0 : index
    %c0_50 = arith.constant 0 : index
    %39 = vector.load %arg2[%c3_48, %c0_49, %c0_50] : memref<5x80x128xbf16, #tpu.memory_space<vmem>>, vector<1x80x128xbf16>
    %40 = vector.shape_cast %39 : vector<1x80x128xbf16> to vector<80x128xbf16>
    %cst_51 = arith.constant dense<0.000000e+00> : vector<16x128xf32>
    %41 = tpu.matmul %38, %40, %cst_51 {dimension_numbers = #tpu.dot_dimension_numbers<[1], [0], [0], [1], [0, 0, 1, 1], [], []>} : vector<16x80xbf16>, vector<80x128xbf16>, vector<16x128xf32> -> vector<16x128xf32>
    %42 = arith.addf %37, %41 : vector<16x128xf32>
    %c4 = arith.constant 4 : index
    %c0_52 = arith.constant 0 : index
    %43 = vector.load %arg9[%c4, %c0_52] : memref<20x80xbf16, #tpu.memory_space<vmem>>, vector<16x80xbf16>
    %c4_53 = arith.constant 4 : index
    %c0_54 = arith.constant 0 : index
    %c0_55 = arith.constant 0 : index
    %44 = vector.load %arg2[%c4_53, %c0_54, %c0_55] : memref<5x80x128xbf16, #tpu.memory_space<vmem>>, vector<1x80x128xbf16>
    %45 = vector.shape_cast %44 : vector<1x80x128xbf16> to vector<80x128xbf16>
    %cst_56 = arith.constant dense<0.000000e+00> : vector<16x128xf32>
    %46 = tpu.matmul %43, %45, %cst_56 {dimension_numbers = #tpu.dot_dimension_numbers<[1], [0], [0], [1], [0, 0, 1, 1], [], []>} : vector<16x80xbf16>, vector<80x128xbf16>, vector<16x128xf32> -> vector<16x128xf32>
    %47 = arith.addf %42, %46 : vector<16x128xf32>
    %c0_57 = arith.constant 0 : index
    %c0_58 = arith.constant 0 : index
    %48 = vector.load %arg5[%c0_57, %c0_58] : memref<1x128xf32, #tpu.memory_space<vmem>>, vector<1x128xf32>
    %49 = vector.broadcast %48 : vector<1x128xf32> to vector<16x128xf32>
    %50 = arith.addf %47, %49 : vector<16x128xf32>
    %cst_59 = arith.constant 5.000000e-01 : f32
    %51 = vector.broadcast %cst_59 : f32 to vector<16x128xf32>
    %52 = arith.mulf %51, %50 : vector<16x128xf32>
    %cst_60 = arith.constant 0.707106769 : f32
    %53 = vector.broadcast %cst_60 : f32 to vector<16x128xf32>
    %54 = arith.mulf %50, %53 : vector<16x128xf32>
    %cst_61 = arith.constant 0.000000e+00 : f32
    %55 = vector.broadcast %cst_61 : f32 to vector<16x128xf32>
    %56 = arith.cmpf olt, %54, %55 : vector<16x128xf32>
    %cst_62 = arith.constant -1.000000e+00 : f32
    %cst_63 = arith.constant 1.000000e+00 : f32
    %57 = vector.broadcast %cst_62 : f32 to vector<16x128xf32>
    %58 = vector.broadcast %cst_63 : f32 to vector<16x128xf32>
    %59 = arith.select %56, %57, %58 : vector<16x128xi1>, vector<16x128xf32>
    %60 = math.absf %54 : vector<16x128xf32>
    %cst_64 = arith.constant 0.327591091 : f32
    %61 = vector.broadcast %cst_64 : f32 to vector<16x128xf32>
    %62 = arith.mulf %61, %60 : vector<16x128xf32>
    %cst_65 = arith.constant 1.000000e+00 : f32
    %63 = vector.broadcast %cst_65 : f32 to vector<16x128xf32>
    %64 = arith.addf %63, %62 : vector<16x128xf32>
    %65 = tpu.reciprocal %64 {approx = true} : vector<16x128xf32> -> vector<16x128xf32>
    %cst_66 = arith.constant 1.06140542 : f32
    %66 = vector.broadcast %cst_66 : f32 to vector<16x128xf32>
    %67 = arith.mulf %66, %65 : vector<16x128xf32>
    %cst_67 = arith.constant -1.45315206 : f32
    %68 = vector.broadcast %cst_67 : f32 to vector<16x128xf32>
    %69 = arith.addf %67, %68 : vector<16x128xf32>
    %70 = arith.mulf %69, %65 : vector<16x128xf32>
    %cst_68 = arith.constant 1.42141378 : f32
    %71 = vector.broadcast %cst_68 : f32 to vector<16x128xf32>
    %72 = arith.addf %70, %71 : vector<16x128xf32>
    %73 = arith.mulf %72, %65 : vector<16x128xf32>
    %cst_69 = arith.constant -0.284496725 : f32
    %74 = vector.broadcast %cst_69 : f32 to vector<16x128xf32>
    %75 = arith.addf %73, %74 : vector<16x128xf32>
    %76 = arith.mulf %75, %65 : vector<16x128xf32>
    %cst_70 = arith.constant 0.254829586 : f32
    %77 = vector.broadcast %cst_70 : f32 to vector<16x128xf32>
    %78 = arith.addf %76, %77 : vector<16x128xf32>
    %79 = arith.mulf %78, %65 : vector<16x128xf32>
    %cst_71 = arith.constant 0.000000e+00 : f32
    %80 = vector.broadcast %cst_71 : f32 to vector<16x128xf32>
    %81 = arith.subf %80, %60 : vector<16x128xf32>
    %82 = arith.mulf %81, %60 : vector<16x128xf32>
    %83 = math.exp %82 : vector<16x128xf32>
    %84 = arith.mulf %79, %83 : vector<16x128xf32>
    %cst_72 = arith.constant 1.000000e+00 : f32
    %85 = vector.broadcast %cst_72 : f32 to vector<16x128xf32>
    %86 = arith.subf %85, %84 : vector<16x128xf32>
    %87 = arith.mulf %59, %86 : vector<16x128xf32>
    %cst_73 = arith.constant 1.000000e+00 : f32
    %88 = vector.broadcast %cst_73 : f32 to vector<16x128xf32>
    %89 = arith.addf %88, %87 : vector<16x128xf32>
    %90 = arith.mulf %52, %89 : vector<16x128xf32>
    %91 = arith.truncf %90 : vector<16x128xf32> to vector<16x128xbf16>
    %92 = vector.extract_strided_slice %91 {offsets = [0, 0], sizes = [1, 128], strides = [1, 1]} : vector<16x128xbf16> to vector<1x128xbf16>
    %c1_74 = arith.constant 1 : index
    %c0_75 = arith.constant 0 : index
    %c0_76 = arith.constant 0 : index
    %93 = vector.load %arg10[%c1_74, %c0_75, %c0_76] : memref<2x9x128xbf16, #tpu.memory_space<vmem>>, vector<1x1x128xbf16>
    %94 = vector.shape_cast %93 : vector<1x1x128xbf16> to vector<1x128xbf16>
    %95 = vector.shape_cast %92 : vector<1x128xbf16> to vector<1x1x128xbf16>
    tpu.vector_store %arg10[%c1_74, %c0_75, %c0_76], %95 {strides = array<i32>} : memref<2x9x128xbf16, #tpu.memory_space<vmem>>, vector<1x1x128xbf16>,
    %96 = vector.extract_strided_slice %91 {offsets = [1, 0], sizes = [1, 128], strides = [1, 1]} : vector<16x128xbf16> to vector<1x128xbf16>
    %c0_77 = arith.constant 0 : index
    %c1_78 = arith.constant 1 : index
    %c0_79 = arith.constant 0 : index
    %97 = vector.load %arg10[%c0_77, %c1_78, %c0_79] : memref<2x9x128xbf16, #tpu.memory_space<vmem>>, vector<1x1x128xbf16>
    %98 = vector.shape_cast %97 : vector<1x1x128xbf16> to vector<1x128xbf16>
    %99 = vector.shape_cast %96 : vector<1x128xbf16> to vector<1x1x128xbf16>
    tpu.vector_store %arg10[%c0_77, %c1_78, %c0_79], %99 {strides = array<i32>} : memref<2x9x128xbf16, #tpu.memory_space<vmem>>, vector<1x1x128xbf16>,
    %100 = vector.extract_strided_slice %91 {offsets = [2, 0], sizes = [1, 128], strides = [1, 1]} : vector<16x128xbf16> to vector<1x128xbf16>
    %c1_80 = arith.constant 1 : index
    %c1_81 = arith.constant 1 : index
    %c0_82 = arith.constant 0 : index
    %101 = vector.load %arg10[%c1_80, %c1_81, %c0_82] : memref<2x9x128xbf16, #tpu.memory_space<vmem>>, vector<1x1x128xbf16>
    %102 = vector.shape_cast %101 : vector<1x1x128xbf16> to vector<1x128xbf16>
    %103 = vector.shape_cast %100 : vector<1x128xbf16> to vector<1x1x128xbf16>
    tpu.vector_store %arg10[%c1_80, %c1_81, %c0_82], %103 {strides = array<i32>} : memref<2x9x128xbf16, #tpu.memory_space<vmem>>, vector<1x1x128xbf16>,
    %104 = vector.extract_strided_slice %91 {offsets = [3, 0], sizes = [1, 128], strides = [1, 1]} : vector<16x128xbf16> to vector<1x128xbf16>
    %c0_83 = arith.constant 0 : index
    %c2_84 = arith.constant 2 : index
    %c0_85 = arith.constant 0 : index
    %105 = vector.load %arg10[%c0_83, %c2_84, %c0_85] : memref<2x9x128xbf16, #tpu.memory_space<vmem>>, vector<1x1x128xbf16>
    %106 = vector.shape_cast %105 : vector<1x1x128xbf16> to vector<1x128xbf16>
    %107 = vector.shape_cast %104 : vector<1x128xbf16> to vector<1x1x128xbf16>
    tpu.vector_store %arg10[%c0_83, %c2_84, %c0_85], %107 {strides = array<i32>} : memref<2x9x128xbf16, #tpu.memory_space<vmem>>, vector<1x1x128xbf16>,
    %108 = vector.extract_strided_slice %91 {offsets = [4, 0], sizes = [1, 128], strides = [1, 1]} : vector<16x128xbf16> to vector<1x128xbf16>
    %c1_86 = arith.constant 1 : index
    %c2_87 = arith.constant 2 : index
    %c0_88 = arith.constant 0 : index
    %109 = vector.load %arg10[%c1_86, %c2_87, %c0_88] : memref<2x9x128xbf16, #tpu.memory_space<vmem>>, vector<1x1x128xbf16>
    %110 = vector.shape_cast %109 : vector<1x1x128xbf16> to vector<1x128xbf16>
    %111 = vector.shape_cast %108 : vector<1x128xbf16> to vector<1x1x128xbf16>
    tpu.vector_store %arg10[%c1_86, %c2_87, %c0_88], %111 {strides = array<i32>} : memref<2x9x128xbf16, #tpu.memory_space<vmem>>, vector<1x1x128xbf16>,
    %112 = vector.extract_strided_slice %91 {offsets = [5, 0], sizes = [1, 128], strides = [1, 1]} : vector<16x128xbf16> to vector<1x128xbf16>
    %c0_89 = arith.constant 0 : index
    %c3_90 = arith.constant 3 : index
    %c0_91 = arith.constant 0 : index
    %113 = vector.load %arg10[%c0_89, %c3_90, %c0_91] : memref<2x9x128xbf16, #tpu.memory_space<vmem>>, vector<1x1x128xbf16>
    %114 = vector.shape_cast %113 : vector<1x1x128xbf16> to vector<1x128xbf16>
    %115 = vector.shape_cast %112 : vector<1x128xbf16> to vector<1x1x128xbf16>
    tpu.vector_store %arg10[%c0_89, %c3_90, %c0_91], %115 {strides = array<i32>} : memref<2x9x128xbf16, #tpu.memory_space<vmem>>, vector<1x1x128xbf16>,
    %116 = vector.extract_strided_slice %91 {offsets = [6, 0], sizes = [1, 128], strides = [1, 1]} : vector<16x128xbf16> to vector<1x128xbf16>
    %c1_92 = arith.constant 1 : index
    %c3_93 = arith.constant 3 : index
    %c0_94 = arith.constant 0 : index
    %117 = vector.load %arg10[%c1_92, %c3_93, %c0_94] : memref<2x9x128xbf16, #tpu.memory_space<vmem>>, vector<1x1x128xbf16>
    %118 = vector.shape_cast %117 : vector<1x1x128xbf16> to vector<1x128xbf16>
    %119 = vector.shape_cast %116 : vector<1x128xbf16> to vector<1x1x128xbf16>
    tpu.vector_store %arg10[%c1_92, %c3_93, %c0_94], %119 {strides = array<i32>} : memref<2x9x128xbf16, #tpu.memory_space<vmem>>, vector<1x1x128xbf16>,
    %120 = vector.extract_strided_slice %91 {offsets = [7, 0], sizes = [1, 128], strides = [1, 1]} : vector<16x128xbf16> to vector<1x128xbf16>
    %c0_95 = arith.constant 0 : index
    %c4_96 = arith.constant 4 : index
    %c0_97 = arith.constant 0 : index
    %121 = vector.load %arg10[%c0_95, %c4_96, %c0_97] : memref<2x9x128xbf16, #tpu.memory_space<vmem>>, vector<1x1x128xbf16>
    %122 = vector.shape_cast %121 : vector<1x1x128xbf16> to vector<1x128xbf16>
    %123 = vector.shape_cast %120 : vector<1x128xbf16> to vector<1x1x128xbf16>
    tpu.vector_store %arg10[%c0_95, %c4_96, %c0_97], %123 {strides = array<i32>} : memref<2x9x128xbf16, #tpu.memory_space<vmem>>, vector<1x1x128xbf16>,
    %124 = vector.extract_strided_slice %91 {offsets = [8, 0], sizes = [1, 128], strides = [1, 1]} : vector<16x128xbf16> to vector<1x128xbf16>
    %c1_98 = arith.constant 1 : index
    %c4_99 = arith.constant 4 : index
    %c0_100 = arith.constant 0 : index
    %125 = vector.load %arg10[%c1_98, %c4_99, %c0_100] : memref<2x9x128xbf16, #tpu.memory_space<vmem>>, vector<1x1x128xbf16>
    %126 = vector.shape_cast %125 : vector<1x1x128xbf16> to vector<1x128xbf16>
    %127 = vector.shape_cast %124 : vector<1x128xbf16> to vector<1x1x128xbf16>
    tpu.vector_store %arg10[%c1_98, %c4_99, %c0_100], %127 {strides = array<i32>} : memref<2x9x128xbf16, #tpu.memory_space<vmem>>, vector<1x1x128xbf16>,
    %128 = vector.extract_strided_slice %91 {offsets = [9, 0], sizes = [1, 128], strides = [1, 1]} : vector<16x128xbf16> to vector<1x128xbf16>
    %c0_101 = arith.constant 0 : index
    %c5 = arith.constant 5 : index
    %c0_102 = arith.constant 0 : index
    %129 = vector.load %arg10[%c0_101, %c5, %c0_102] : memref<2x9x128xbf16, #tpu.memory_space<vmem>>, vector<1x1x128xbf16>
    %130 = vector.shape_cast %129 : vector<1x1x128xbf16> to vector<1x128xbf16>
    %131 = vector.shape_cast %128 : vector<1x128xbf16> to vector<1x1x128xbf16>
    tpu.vector_store %arg10[%c0_101, %c5, %c0_102], %131 {strides = array<i32>} : memref<2x9x128xbf16, #tpu.memory_space<vmem>>, vector<1x1x128xbf16>,
    %132 = vector.extract_strided_slice %91 {offsets = [10, 0], sizes = [1, 128], strides = [1, 1]} : vector<16x128xbf16> to vector<1x128xbf16>
    %c1_103 = arith.constant 1 : index
    %c5_104 = arith.constant 5 : index
    %c0_105 = arith.constant 0 : index
    %133 = vector.load %arg10[%c1_103, %c5_104, %c0_105] : memref<2x9x128xbf16, #tpu.memory_space<vmem>>, vector<1x1x128xbf16>
    %134 = vector.shape_cast %133 : vector<1x1x128xbf16> to vector<1x128xbf16>
    %135 = vector.shape_cast %132 : vector<1x128xbf16> to vector<1x1x128xbf16>
    tpu.vector_store %arg10[%c1_103, %c5_104, %c0_105], %135 {strides = array<i32>} : memref<2x9x128xbf16, #tpu.memory_space<vmem>>, vector<1x1x128xbf16>,
    %136 = vector.extract_strided_slice %91 {offsets = [11, 0], sizes = [1, 128], strides = [1, 1]} : vector<16x128xbf16> to vector<1x128xbf16>
    %c0_106 = arith.constant 0 : index
    %c6 = arith.constant 6 : index
    %c0_107 = arith.constant 0 : index
    %137 = vector.load %arg10[%c0_106, %c6, %c0_107] : memref<2x9x128xbf16, #tpu.memory_space<vmem>>, vector<1x1x128xbf16>
    %138 = vector.shape_cast %137 : vector<1x1x128xbf16> to vector<1x128xbf16>
    %139 = vector.shape_cast %136 : vector<1x128xbf16> to vector<1x1x128xbf16>
    tpu.vector_store %arg10[%c0_106, %c6, %c0_107], %139 {strides = array<i32>} : memref<2x9x128xbf16, #tpu.memory_space<vmem>>, vector<1x1x128xbf16>,
    %140 = vector.extract_strided_slice %91 {offsets = [12, 0], sizes = [1, 128], strides = [1, 1]} : vector<16x128xbf16> to vector<1x128xbf16>
    %c1_108 = arith.constant 1 : index
    %c6_109 = arith.constant 6 : index
    %c0_110 = arith.constant 0 : index
    %141 = vector.load %arg10[%c1_108, %c6_109, %c0_110] : memref<2x9x128xbf16, #tpu.memory_space<vmem>>, vector<1x1x128xbf16>
    %142 = vector.shape_cast %141 : vector<1x1x128xbf16> to vector<1x128xbf16>
    %143 = vector.shape_cast %140 : vector<1x128xbf16> to vector<1x1x128xbf16>
    tpu.vector_store %arg10[%c1_108, %c6_109, %c0_110], %143 {strides = array<i32>} : memref<2x9x128xbf16, #tpu.memory_space<vmem>>, vector<1x1x128xbf16>,
    %144 = vector.extract_strided_slice %91 {offsets = [13, 0], sizes = [1, 128], strides = [1, 1]} : vector<16x128xbf16> to vector<1x128xbf16>
    %c0_111 = arith.constant 0 : index
    %c7 = arith.constant 7 : index
    %c0_112 = arith.constant 0 : index
    %145 = vector.load %arg10[%c0_111, %c7, %c0_112] : memref<2x9x128xbf16, #tpu.memory_space<vmem>>, vector<1x1x128xbf16>
    %146 = vector.shape_cast %145 : vector<1x1x128xbf16> to vector<1x128xbf16>
    %147 = vector.shape_cast %144 : vector<1x128xbf16> to vector<1x1x128xbf16>
    tpu.vector_store %arg10[%c0_111, %c7, %c0_112], %147 {strides = array<i32>} : memref<2x9x128xbf16, #tpu.memory_space<vmem>>, vector<1x1x128xbf16>,
    %148 = vector.extract_strided_slice %91 {offsets = [14, 0], sizes = [1, 128], strides = [1, 1]} : vector<16x128xbf16> to vector<1x128xbf16>
    %c1_113 = arith.constant 1 : index
    %c7_114 = arith.constant 7 : index
    %c0_115 = arith.constant 0 : index
    %149 = vector.load %arg10[%c1_113, %c7_114, %c0_115] : memref<2x9x128xbf16, #tpu.memory_space<vmem>>, vector<1x1x128xbf16>
    %150 = vector.shape_cast %149 : vector<1x1x128xbf16> to vector<1x128xbf16>
    %151 = vector.shape_cast %148 : vector<1x128xbf16> to vector<1x1x128xbf16>
    tpu.vector_store %arg10[%c1_113, %c7_114, %c0_115], %151 {strides = array<i32>} : memref<2x9x128xbf16, #tpu.memory_space<vmem>>, vector<1x1x128xbf16>,
    %152 = vector.extract_strided_slice %91 {offsets = [15, 0], sizes = [1, 128], strides = [1, 1]} : vector<16x128xbf16> to vector<1x128xbf16>
    %c0_116 = arith.constant 0 : index
    %c8 = arith.constant 8 : index
    %c0_117 = arith.constant 0 : index
    %153 = vector.load %arg10[%c0_116, %c8, %c0_117] : memref<2x9x128xbf16, #tpu.memory_space<vmem>>, vector<1x1x128xbf16>
    %154 = vector.shape_cast %153 : vector<1x1x128xbf16> to vector<1x128xbf16>
    %155 = vector.shape_cast %152 : vector<1x128xbf16> to vector<1x1x128xbf16>
    tpu.vector_store %arg10[%c0_116, %c8, %c0_117], %155 {strides = array<i32>} : memref<2x9x128xbf16, #tpu.memory_space<vmem>>, vector<1x1x128xbf16>,
    %cst_118 = arith.constant 0.000000e+00 : f32
    %156 = vector.broadcast %cst_118 : f32 to vector<8x128xf32>
    %c0_119 = arith.constant 0 : index
    %c0_120 = arith.constant 0 : index
    %c0_121 = arith.constant 0 : index
    %157 = vector.load %arg10[%c0_119, %c0_120, %c0_121] : memref<2x9x128xbf16, #tpu.memory_space<vmem>>, vector<1x8x128xbf16>
    %158 = vector.shape_cast %157 : vector<1x8x128xbf16> to vector<8x128xbf16>
    %c0_122 = arith.constant 0 : index
    %c0_123 = arith.constant 0 : index
    %c0_124 = arith.constant 0 : index
    %159 = vector.load %arg3[%c0_122, %c0_123, %c0_124] : memref<3x128x128xbf16, #tpu.memory_space<vmem>>, vector<1x128x128xbf16>
    %160 = vector.shape_cast %159 : vector<1x128x128xbf16> to vector<128x128xbf16>
    %cst_125 = arith.constant dense<0.000000e+00> : vector<8x128xf32>
    %161 = tpu.matmul %158, %160, %cst_125 {dimension_numbers = #tpu.dot_dimension_numbers<[1], [0], [0], [1], [0, 0, 1, 1], [], []>} : vector<8x128xbf16>, vector<128x128xbf16>, vector<8x128xf32> -> vector<8x128xf32>
    %162 = arith.addf %156, %161 : vector<8x128xf32>
    %c1_126 = arith.constant 1 : index
    %c0_127 = arith.constant 0 : index
    %c0_128 = arith.constant 0 : index
    %163 = vector.load %arg10[%c1_126, %c0_127, %c0_128] : memref<2x9x128xbf16, #tpu.memory_space<vmem>>, vector<1x8x128xbf16>
    %164 = vector.shape_cast %163 : vector<1x8x128xbf16> to vector<8x128xbf16>
    %c1_129 = arith.constant 1 : index
    %c0_130 = arith.constant 0 : index
    %c0_131 = arith.constant 0 : index
    %165 = vector.load %arg3[%c1_129, %c0_130, %c0_131] : memref<3x128x128xbf16, #tpu.memory_space<vmem>>, vector<1x128x128xbf16>
    %166 = vector.shape_cast %165 : vector<1x128x128xbf16> to vector<128x128xbf16>
    %cst_132 = arith.constant dense<0.000000e+00> : vector<8x128xf32>
    %167 = tpu.matmul %164, %166, %cst_132 {dimension_numbers = #tpu.dot_dimension_numbers<[1], [0], [0], [1], [0, 0, 1, 1], [], []>} : vector<8x128xbf16>, vector<128x128xbf16>, vector<8x128xf32> -> vector<8x128xf32>
    %168 = arith.addf %162, %167 : vector<8x128xf32>
    %c0_133 = arith.constant 0 : index
    %c1_134 = arith.constant 1 : index
    %c0_135 = arith.constant 0 : index
    %169 = vector.load %arg10[%c0_133, %c1_134, %c0_135] : memref<2x9x128xbf16, #tpu.memory_space<vmem>>, vector<1x8x128xbf16>
    %170 = vector.shape_cast %169 : vector<1x8x128xbf16> to vector<8x128xbf16>
    %c2_136 = arith.constant 2 : index
    %c0_137 = arith.constant 0 : index
    %c0_138 = arith.constant 0 : index
    %171 = vector.load %arg3[%c2_136, %c0_137, %c0_138] : memref<3x128x128xbf16, #tpu.memory_space<vmem>>, vector<1x128x128xbf16>
    %172 = vector.shape_cast %171 : vector<1x128x128xbf16> to vector<128x128xbf16>
    %cst_139 = arith.constant dense<0.000000e+00> : vector<8x128xf32>
    %173 = tpu.matmul %170, %172, %cst_139 {dimension_numbers = #tpu.dot_dimension_numbers<[1], [0], [0], [1], [0, 0, 1, 1], [], []>} : vector<8x128xbf16>, vector<128x128xbf16>, vector<8x128xf32> -> vector<8x128xf32>
    %174 = arith.addf %168, %173 : vector<8x128xf32>
    %c0_140 = arith.constant 0 : index
    %c0_141 = arith.constant 0 : index
    %175 = vector.load %arg6[%c0_140, %c0_141] : memref<1x128xf32, #tpu.memory_space<vmem>>, vector<1x128xf32>
    %176 = vector.broadcast %175 : vector<1x128xf32> to vector<8x128xf32>
    %177 = arith.addf %174, %176 : vector<8x128xf32>
    %cst_142 = arith.constant 5.000000e-01 : f32
    %178 = vector.broadcast %cst_142 : f32 to vector<8x128xf32>
    %179 = arith.mulf %178, %177 : vector<8x128xf32>
    %cst_143 = arith.constant 0.707106769 : f32
    %180 = vector.broadcast %cst_143 : f32 to vector<8x128xf32>
    %181 = arith.mulf %177, %180 : vector<8x128xf32>
    %cst_144 = arith.constant 0.000000e+00 : f32
    %182 = vector.broadcast %cst_144 : f32 to vector<8x128xf32>
    %183 = arith.cmpf olt, %181, %182 : vector<8x128xf32>
    %cst_145 = arith.constant -1.000000e+00 : f32
    %cst_146 = arith.constant 1.000000e+00 : f32
    %184 = vector.broadcast %cst_145 : f32 to vector<8x128xf32>
    %185 = vector.broadcast %cst_146 : f32 to vector<8x128xf32>
    %186 = arith.select %183, %184, %185 : vector<8x128xi1>, vector<8x128xf32>
    %187 = math.absf %181 : vector<8x128xf32>
    %cst_147 = arith.constant 0.327591091 : f32
    %188 = vector.broadcast %cst_147 : f32 to vector<8x128xf32>
    %189 = arith.mulf %188, %187 : vector<8x128xf32>
    %cst_148 = arith.constant 1.000000e+00 : f32
    %190 = vector.broadcast %cst_148 : f32 to vector<8x128xf32>
    %191 = arith.addf %190, %189 : vector<8x128xf32>
    %192 = tpu.reciprocal %191 {approx = true} : vector<8x128xf32> -> vector<8x128xf32>
    %cst_149 = arith.constant 1.06140542 : f32
    %193 = vector.broadcast %cst_149 : f32 to vector<8x128xf32>
    %194 = arith.mulf %193, %192 : vector<8x128xf32>
    %cst_150 = arith.constant -1.45315206 : f32
    %195 = vector.broadcast %cst_150 : f32 to vector<8x128xf32>
    %196 = arith.addf %194, %195 : vector<8x128xf32>
    %197 = arith.mulf %196, %192 : vector<8x128xf32>
    %cst_151 = arith.constant 1.42141378 : f32
    %198 = vector.broadcast %cst_151 : f32 to vector<8x128xf32>
    %199 = arith.addf %197, %198 : vector<8x128xf32>
    %200 = arith.mulf %199, %192 : vector<8x128xf32>
    %cst_152 = arith.constant -0.284496725 : f32
    %201 = vector.broadcast %cst_152 : f32 to vector<8x128xf32>
    %202 = arith.addf %200, %201 : vector<8x128xf32>
    %203 = arith.mulf %202, %192 : vector<8x128xf32>
    %cst_153 = arith.constant 0.254829586 : f32
    %204 = vector.broadcast %cst_153 : f32 to vector<8x128xf32>
    %205 = arith.addf %203, %204 : vector<8x128xf32>
    %206 = arith.mulf %205, %192 : vector<8x128xf32>
    %cst_154 = arith.constant 0.000000e+00 : f32
    %207 = vector.broadcast %cst_154 : f32 to vector<8x128xf32>
    %208 = arith.subf %207, %187 : vector<8x128xf32>
    %209 = arith.mulf %208, %187 : vector<8x128xf32>
    %210 = math.exp %209 : vector<8x128xf32>
    %211 = arith.mulf %206, %210 : vector<8x128xf32>
    %cst_155 = arith.constant 1.000000e+00 : f32
    %212 = vector.broadcast %cst_155 : f32 to vector<8x128xf32>
    %213 = arith.subf %212, %211 : vector<8x128xf32>
    %214 = arith.mulf %186, %213 : vector<8x128xf32>
    %cst_156 = arith.constant 1.000000e+00 : f32
    %215 = vector.broadcast %cst_156 : f32 to vector<8x128xf32>
    %216 = arith.addf %215, %214 : vector<8x128xf32>
    %217 = arith.mulf %179, %216 : vector<8x128xf32>
    %218 = arith.truncf %217 : vector<8x128xf32> to vector<8x128xbf16>
    %219 = vector.extract_strided_slice %218 {offsets = [0, 0], sizes = [1, 128], strides = [1, 1]} : vector<8x128xbf16> to vector<1x128xbf16>
    %c0_157 = arith.constant 0 : index
    %c0_158 = arith.constant 0 : index
    %c0_159 = arith.constant 0 : index
    %220 = vector.load %arg11[%c0_157, %c0_158, %c0_159] : memref<2x4x128xbf16, #tpu.memory_space<vmem>>, vector<1x1x128xbf16>
    %221 = vector.shape_cast %220 : vector<1x1x128xbf16> to vector<1x128xbf16>
    %222 = vector.shape_cast %219 : vector<1x128xbf16> to vector<1x1x128xbf16>
    tpu.vector_store %arg11[%c0_157, %c0_158, %c0_159], %222 {strides = array<i32>} : memref<2x4x128xbf16, #tpu.memory_space<vmem>>, vector<1x1x128xbf16>,
    %223 = vector.extract_strided_slice %218 {offsets = [1, 0], sizes = [1, 128], strides = [1, 1]} : vector<8x128xbf16> to vector<1x128xbf16>
    %c1_160 = arith.constant 1 : index
    %c0_161 = arith.constant 0 : index
    %c0_162 = arith.constant 0 : index
    %224 = vector.load %arg11[%c1_160, %c0_161, %c0_162] : memref<2x4x128xbf16, #tpu.memory_space<vmem>>, vector<1x1x128xbf16>
    %225 = vector.shape_cast %224 : vector<1x1x128xbf16> to vector<1x128xbf16>
    %226 = vector.shape_cast %223 : vector<1x128xbf16> to vector<1x1x128xbf16>
    tpu.vector_store %arg11[%c1_160, %c0_161, %c0_162], %226 {strides = array<i32>} : memref<2x4x128xbf16, #tpu.memory_space<vmem>>, vector<1x1x128xbf16>,
    %227 = vector.extract_strided_slice %218 {offsets = [2, 0], sizes = [1, 128], strides = [1, 1]} : vector<8x128xbf16> to vector<1x128xbf16>
    %c0_163 = arith.constant 0 : index
    %c1_164 = arith.constant 1 : index
    %c0_165 = arith.constant 0 : index
    %228 = vector.load %arg11[%c0_163, %c1_164, %c0_165] : memref<2x4x128xbf16, #tpu.memory_space<vmem>>, vector<1x1x128xbf16>
    %229 = vector.shape_cast %228 : vector<1x1x128xbf16> to vector<1x128xbf16>
    %230 = vector.shape_cast %227 : vector<1x128xbf16> to vector<1x1x128xbf16>
    tpu.vector_store %arg11[%c0_163, %c1_164, %c0_165], %230 {strides = array<i32>} : memref<2x4x128xbf16, #tpu.memory_space<vmem>>, vector<1x1x128xbf16>,
    %231 = vector.extract_strided_slice %218 {offsets = [3, 0], sizes = [1, 128], strides = [1, 1]} : vector<8x128xbf16> to vector<1x128xbf16>
    %c1_166 = arith.constant 1 : index
    %c1_167 = arith.constant 1 : index
    %c0_168 = arith.constant 0 : index
    %232 = vector.load %arg11[%c1_166, %c1_167, %c0_168] : memref<2x4x128xbf16, #tpu.memory_space<vmem>>, vector<1x1x128xbf16>
    %233 = vector.shape_cast %232 : vector<1x1x128xbf16> to vector<1x128xbf16>
    %234 = vector.shape_cast %231 : vector<1x128xbf16> to vector<1x1x128xbf16>
    tpu.vector_store %arg11[%c1_166, %c1_167, %c0_168], %234 {strides = array<i32>} : memref<2x4x128xbf16, #tpu.memory_space<vmem>>, vector<1x1x128xbf16>,
    %235 = vector.extract_strided_slice %218 {offsets = [4, 0], sizes = [1, 128], strides = [1, 1]} : vector<8x128xbf16> to vector<1x128xbf16>
    %c0_169 = arith.constant 0 : index
    %c2_170 = arith.constant 2 : index
    %c0_171 = arith.constant 0 : index
    %236 = vector.load %arg11[%c0_169, %c2_170, %c0_171] : memref<2x4x128xbf16, #tpu.memory_space<vmem>>, vector<1x1x128xbf16>
    %237 = vector.shape_cast %236 : vector<1x1x128xbf16> to vector<1x128xbf16>
    %238 = vector.shape_cast %235 : vector<1x128xbf16> to vector<1x1x128xbf16>
    tpu.vector_store %arg11[%c0_169, %c2_170, %c0_171], %238 {strides = array<i32>} : memref<2x4x128xbf16, #tpu.memory_space<vmem>>, vector<1x1x128xbf16>,
    %239 = vector.extract_strided_slice %218 {offsets = [5, 0], sizes = [1, 128], strides = [1, 1]} : vector<8x128xbf16> to vector<1x128xbf16>
    %c1_172 = arith.constant 1 : index
    %c2_173 = arith.constant 2 : index
    %c0_174 = arith.constant 0 : index
    %240 = vector.load %arg11[%c1_172, %c2_173, %c0_174] : memref<2x4x128xbf16, #tpu.memory_space<vmem>>, vector<1x1x128xbf16>
    %241 = vector.shape_cast %240 : vector<1x1x128xbf16> to vector<1x128xbf16>
    %242 = vector.shape_cast %239 : vector<1x128xbf16> to vector<1x1x128xbf16>
    tpu.vector_store %arg11[%c1_172, %c2_173, %c0_174], %242 {strides = array<i32>} : memref<2x4x128xbf16, #tpu.memory_space<vmem>>, vector<1x1x128xbf16>,
    %243 = vector.extract_strided_slice %218 {offsets = [6, 0], sizes = [1, 128], strides = [1, 1]} : vector<8x128xbf16> to vector<1x128xbf16>
    %c0_175 = arith.constant 0 : index
    %c3_176 = arith.constant 3 : index
    %c0_177 = arith.constant 0 : index
    %244 = vector.load %arg11[%c0_175, %c3_176, %c0_177] : memref<2x4x128xbf16, #tpu.memory_space<vmem>>, vector<1x1x128xbf16>
    %245 = vector.shape_cast %244 : vector<1x1x128xbf16> to vector<1x128xbf16>
    %246 = vector.shape_cast %243 : vector<1x128xbf16> to vector<1x1x128xbf16>
    tpu.vector_store %arg11[%c0_175, %c3_176, %c0_177], %246 {strides = array<i32>} : memref<2x4x128xbf16, #tpu.memory_space<vmem>>, vector<1x1x128xbf16>,
    %247 = vector.extract_strided_slice %218 {offsets = [7, 0], sizes = [1, 128], strides = [1, 1]} : vector<8x128xbf16> to vector<1x128xbf16>
    %c1_178 = arith.constant 1 : index
    %c3_179 = arith.constant 3 : index
    %c0_180 = arith.constant 0 : index
    %248 = vector.load %arg11[%c1_178, %c3_179, %c0_180] : memref<2x4x128xbf16, #tpu.memory_space<vmem>>, vector<1x1x128xbf16>
    %249 = vector.shape_cast %248 : vector<1x1x128xbf16> to vector<1x128xbf16>
    %250 = vector.shape_cast %247 : vector<1x128xbf16> to vector<1x1x128xbf16>
    tpu.vector_store %arg11[%c1_178, %c3_179, %c0_180], %250 {strides = array<i32>} : memref<2x4x128xbf16, #tpu.memory_space<vmem>>, vector<1x1x128xbf16>,
    %cst_181 = arith.constant 0.000000e+00 : f32
    %251 = vector.broadcast %cst_181 : f32 to vector<3x96xf32>
    %c0_182 = arith.constant 0 : index
    %c0_183 = arith.constant 0 : index
    %c0_184 = arith.constant 0 : index
    %252 = vector.load %arg11[%c0_182, %c0_183, %c0_184] : memref<2x4x128xbf16, #tpu.memory_space<vmem>>, vector<1x3x128xbf16>
    %253 = vector.shape_cast %252 : vector<1x3x128xbf16> to vector<3x128xbf16>
    %c0_185 = arith.constant 0 : index
    %c0_186 = arith.constant 0 : index
    %c0_187 = arith.constant 0 : index
    %254 = vector.load %arg4[%c0_185, %c0_186, %c0_187] : memref<4x128x96xbf16, #tpu.memory_space<vmem>>, vector<1x128x96xbf16>
    %255 = vector.shape_cast %254 : vector<1x128x96xbf16> to vector<128x96xbf16>
    %cst_188 = arith.constant dense<0.000000e+00> : vector<3x96xf32>
    %256 = tpu.matmul %253, %255, %cst_188 {dimension_numbers = #tpu.dot_dimension_numbers<[1], [0], [0], [1], [0, 0, 1, 1], [], []>} : vector<3x128xbf16>, vector<128x96xbf16>, vector<3x96xf32> -> vector<3x96xf32>
    %257 = arith.addf %251, %256 : vector<3x96xf32>
    %c1_189 = arith.constant 1 : index
    %c0_190 = arith.constant 0 : index
    %c0_191 = arith.constant 0 : index
    %258 = vector.load %arg11[%c1_189, %c0_190, %c0_191] : memref<2x4x128xbf16, #tpu.memory_space<vmem>>, vector<1x3x128xbf16>
    %259 = vector.shape_cast %258 : vector<1x3x128xbf16> to vector<3x128xbf16>
    %c1_192 = arith.constant 1 : index
    %c0_193 = arith.constant 0 : index
    %c0_194 = arith.constant 0 : index
    %260 = vector.load %arg4[%c1_192, %c0_193, %c0_194] : memref<4x128x96xbf16, #tpu.memory_space<vmem>>, vector<1x128x96xbf16>
    %261 = vector.shape_cast %260 : vector<1x128x96xbf16> to vector<128x96xbf16>
    %cst_195 = arith.constant dense<0.000000e+00> : vector<3x96xf32>
    %262 = tpu.matmul %259, %261, %cst_195 {dimension_numbers = #tpu.dot_dimension_numbers<[1], [0], [0], [1], [0, 0, 1, 1], [], []>} : vector<3x128xbf16>, vector<128x96xbf16>, vector<3x96xf32> -> vector<3x96xf32>
    %263 = arith.addf %257, %262 : vector<3x96xf32>
    %c0_196 = arith.constant 0 : index
    %c1_197 = arith.constant 1 : index
    %c0_198 = arith.constant 0 : index
    %264 = vector.load %arg11[%c0_196, %c1_197, %c0_198] : memref<2x4x128xbf16, #tpu.memory_space<vmem>>, vector<1x3x128xbf16>
    %265 = vector.shape_cast %264 : vector<1x3x128xbf16> to vector<3x128xbf16>
    %c2_199 = arith.constant 2 : index
    %c0_200 = arith.constant 0 : index
    %c0_201 = arith.constant 0 : index
    %266 = vector.load %arg4[%c2_199, %c0_200, %c0_201] : memref<4x128x96xbf16, #tpu.memory_space<vmem>>, vector<1x128x96xbf16>
    %267 = vector.shape_cast %266 : vector<1x128x96xbf16> to vector<128x96xbf16>
    %cst_202 = arith.constant dense<0.000000e+00> : vector<3x96xf32>
    %268 = tpu.matmul %265, %267, %cst_202 {dimension_numbers = #tpu.dot_dimension_numbers<[1], [0], [0], [1], [0, 0, 1, 1], [], []>} : vector<3x128xbf16>, vector<128x96xbf16>, vector<3x96xf32> -> vector<3x96xf32>
    %269 = arith.addf %263, %268 : vector<3x96xf32>
    %c1_203 = arith.constant 1 : index
    %c1_204 = arith.constant 1 : index
    %c0_205 = arith.constant 0 : index
    %270 = vector.load %arg11[%c1_203, %c1_204, %c0_205] : memref<2x4x128xbf16, #tpu.memory_space<vmem>>, vector<1x3x128xbf16>
    %271 = vector.shape_cast %270 : vector<1x3x128xbf16> to vector<3x128xbf16>
    %c3_206 = arith.constant 3 : index
    %c0_207 = arith.constant 0 : index
    %c0_208 = arith.constant 0 : index
    %272 = vector.load %arg4[%c3_206, %c0_207, %c0_208] : memref<4x128x96xbf16, #tpu.memory_space<vmem>>, vector<1x128x96xbf16>
    %273 = vector.shape_cast %272 : vector<1x128x96xbf16> to vector<128x96xbf16>
    %cst_209 = arith.constant dense<0.000000e+00> : vector<3x96xf32>
    %274 = tpu.matmul %271, %273, %cst_209 {dimension_numbers = #tpu.dot_dimension_numbers<[1], [0], [0], [1], [0, 0, 1, 1], [], []>} : vector<3x128xbf16>, vector<128x96xbf16>, vector<3x96xf32> -> vector<3x96xf32>
    %275 = arith.addf %269, %274 : vector<3x96xf32>
    %c0_210 = arith.constant 0 : index
    %c0_211 = arith.constant 0 : index
    %276 = vector.load %arg7[%c0_210, %c0_211] : memref<1x96xf32, #tpu.memory_space<vmem>>, vector<1x96xf32>
    %277 = vector.broadcast %276 : vector<1x96xf32> to vector<3x96xf32>
    %278 = arith.addf %275, %277 : vector<3x96xf32>
    %279 = vector.extract_strided_slice %278 {offsets = [0, 0], sizes = [1, 32], strides = [1, 1]} : vector<3x96xf32> to vector<1x32xf32>
    %c0_212 = arith.constant 0 : index
    %c0_213 = arith.constant 0 : index
    %c0_214 = arith.constant 0 : index
    %280 = vector.load %arg8[%c0_212, %c0_213, %c0_214] : memref<1x9x32xf32, #tpu.memory_space<vmem>>, vector<1x1x32xf32>
    %281 = vector.shape_cast %280 : vector<1x1x32xf32> to vector<1x32xf32>
    %282 = vector.shape_cast %279 : vector<1x32xf32> to vector<1x1x32xf32>
    tpu.vector_store %arg8[%c0_212, %c0_213, %c0_214], %282 {strides = array<i32>} : memref<1x9x32xf32, #tpu.memory_space<vmem>>, vector<1x1x32xf32>,
    %283 = vector.extract_strided_slice %278 {offsets = [0, 32], sizes = [1, 32], strides = [1, 1]} : vector<3x96xf32> to vector<1x32xf32>
    %c0_215 = arith.constant 0 : index
    %c1_216 = arith.constant 1 : index
    %c0_217 = arith.constant 0 : index
    %284 = vector.load %arg8[%c0_215, %c1_216, %c0_217] : memref<1x9x32xf32, #tpu.memory_space<vmem>>, vector<1x1x32xf32>
    %285 = vector.shape_cast %284 : vector<1x1x32xf32> to vector<1x32xf32>
    %286 = vector.shape_cast %283 : vector<1x32xf32> to vector<1x1x32xf32>
    tpu.vector_store %arg8[%c0_215, %c1_216, %c0_217], %286 {strides = array<i32>} : memref<1x9x32xf32, #tpu.memory_space<vmem>>, vector<1x1x32xf32>,
    %287 = vector.extract_strided_slice %278 {offsets = [0, 64], sizes = [1, 32], strides = [1, 1]} : vector<3x96xf32> to vector<1x32xf32>
    %c0_218 = arith.constant 0 : index
    %c2_219 = arith.constant 2 : index
    %c0_220 = arith.constant 0 : index
    %288 = vector.load %arg8[%c0_218, %c2_219, %c0_220] : memref<1x9x32xf32, #tpu.memory_space<vmem>>, vector<1x1x32xf32>
    %289 = vector.shape_cast %288 : vector<1x1x32xf32> to vector<1x32xf32>
    %290 = vector.shape_cast %287 : vector<1x32xf32> to vector<1x1x32xf32>
    tpu.vector_store %arg8[%c0_218, %c2_219, %c0_220], %290 {strides = array<i32>} : memref<1x9x32xf32, #tpu.memory_space<vmem>>, vector<1x1x32xf32>,
    %291 = vector.extract_strided_slice %278 {offsets = [1, 0], sizes = [1, 32], strides = [1, 1]} : vector<3x96xf32> to vector<1x32xf32>
    %c0_221 = arith.constant 0 : index
    %c3_222 = arith.constant 3 : index
    %c0_223 = arith.constant 0 : index
    %292 = vector.load %arg8[%c0_221, %c3_222, %c0_223] : memref<1x9x32xf32, #tpu.memory_space<vmem>>, vector<1x1x32xf32>
    %293 = vector.shape_cast %292 : vector<1x1x32xf32> to vector<1x32xf32>
    %294 = vector.shape_cast %291 : vector<1x32xf32> to vector<1x1x32xf32>
    tpu.vector_store %arg8[%c0_221, %c3_222, %c0_223], %294 {strides = array<i32>} : memref<1x9x32xf32, #tpu.memory_space<vmem>>, vector<1x1x32xf32>,
    %295 = vector.extract_strided_slice %278 {offsets = [1, 32], sizes = [1, 32], strides = [1, 1]} : vector<3x96xf32> to vector<1x32xf32>
    %c0_224 = arith.constant 0 : index
    %c4_225 = arith.constant 4 : index
    %c0_226 = arith.constant 0 : index
    %296 = vector.load %arg8[%c0_224, %c4_225, %c0_226] : memref<1x9x32xf32, #tpu.memory_space<vmem>>, vector<1x1x32xf32>
    %297 = vector.shape_cast %296 : vector<1x1x32xf32> to vector<1x32xf32>
    %298 = vector.shape_cast %295 : vector<1x32xf32> to vector<1x1x32xf32>
    tpu.vector_store %arg8[%c0_224, %c4_225, %c0_226], %298 {strides = array<i32>} : memref<1x9x32xf32, #tpu.memory_space<vmem>>, vector<1x1x32xf32>,
    %299 = vector.extract_strided_slice %278 {offsets = [1, 64], sizes = [1, 32], strides = [1, 1]} : vector<3x96xf32> to vector<1x32xf32>
    %c0_227 = arith.constant 0 : index
    %c5_228 = arith.constant 5 : index
    %c0_229 = arith.constant 0 : index
    %300 = vector.load %arg8[%c0_227, %c5_228, %c0_229] : memref<1x9x32xf32, #tpu.memory_space<vmem>>, vector<1x1x32xf32>
    %301 = vector.shape_cast %300 : vector<1x1x32xf32> to vector<1x32xf32>
    %302 = vector.shape_cast %299 : vector<1x32xf32> to vector<1x1x32xf32>
    tpu.vector_store %arg8[%c0_227, %c5_228, %c0_229], %302 {strides = array<i32>} : memref<1x9x32xf32, #tpu.memory_space<vmem>>, vector<1x1x32xf32>,
    %303 = vector.extract_strided_slice %278 {offsets = [2, 0], sizes = [1, 32], strides = [1, 1]} : vector<3x96xf32> to vector<1x32xf32>
    %c0_230 = arith.constant 0 : index
    %c6_231 = arith.constant 6 : index
    %c0_232 = arith.constant 0 : index
    %304 = vector.load %arg8[%c0_230, %c6_231, %c0_232] : memref<1x9x32xf32, #tpu.memory_space<vmem>>, vector<1x1x32xf32>
    %305 = vector.shape_cast %304 : vector<1x1x32xf32> to vector<1x32xf32>
    %306 = vector.shape_cast %303 : vector<1x32xf32> to vector<1x1x32xf32>
    tpu.vector_store %arg8[%c0_230, %c6_231, %c0_232], %306 {strides = array<i32>} : memref<1x9x32xf32, #tpu.memory_space<vmem>>, vector<1x1x32xf32>,
    %307 = vector.extract_strided_slice %278 {offsets = [2, 32], sizes = [1, 32], strides = [1, 1]} : vector<3x96xf32> to vector<1x32xf32>
    %c0_233 = arith.constant 0 : index
    %c7_234 = arith.constant 7 : index
    %c0_235 = arith.constant 0 : index
    %308 = vector.load %arg8[%c0_233, %c7_234, %c0_235] : memref<1x9x32xf32, #tpu.memory_space<vmem>>, vector<1x1x32xf32>
    %309 = vector.shape_cast %308 : vector<1x1x32xf32> to vector<1x32xf32>
    %310 = vector.shape_cast %307 : vector<1x32xf32> to vector<1x1x32xf32>
    tpu.vector_store %arg8[%c0_233, %c7_234, %c0_235], %310 {strides = array<i32>} : memref<1x9x32xf32, #tpu.memory_space<vmem>>, vector<1x1x32xf32>,
    %311 = vector.extract_strided_slice %278 {offsets = [2, 64], sizes = [1, 32], strides = [1, 1]} : vector<3x96xf32> to vector<1x32xf32>
    %c0_236 = arith.constant 0 : index
    %c8_237 = arith.constant 8 : index
    %c0_238 = arith.constant 0 : index
    %312 = vector.load %arg8[%c0_236, %c8_237, %c0_238] : memref<1x9x32xf32, #tpu.memory_space<vmem>>, vector<1x1x32xf32>
    %313 = vector.shape_cast %312 : vector<1x1x32xf32> to vector<1x32xf32>
    %314 = vector.shape_cast %311 : vector<1x32xf32> to vector<1x1x32xf32>
    tpu.vector_store %arg8[%c0_236, %c8_237, %c0_238], %314 {strides = array<i32>} : memref<1x9x32xf32, #tpu.memory_space<vmem>>, vector<1x1x32xf32>,
    return
  }
  func.func @transform_0(%arg0: i32) -> (i32, i32, i32, i32) {
    %c0_i32 = arith.constant 0 : i32
    %c0_i32_0 = arith.constant 0 : i32
    %c0_i32_1 = arith.constant 0 : i32
    %c0_i32_2 = arith.constant 0 : i32
    return %arg0, %c0_i32, %c0_i32_0, %c0_i32_1 : i32, i32, i32, i32
  }
  func.func @transform_1(%arg0: i32) -> (i32, i32, i32) {
    %c0_i32 = arith.constant 0 : i32
    %c0_i32_0 = arith.constant 0 : i32
    %c0_i32_1 = arith.constant 0 : i32
    %c0_i32_2 = arith.constant 0 : i32
    return %c0_i32, %c0_i32_0, %c0_i32_1 : i32, i32, i32
  }
  func.func @transform_2(%arg0: i32) -> (i32, i32, i32) {
    %c0_i32 = arith.constant 0 : i32
    %c0_i32_0 = arith.constant 0 : i32
    %c0_i32_1 = arith.constant 0 : i32
    %c0_i32_2 = arith.constant 0 : i32
    return %c0_i32, %c0_i32_0, %c0_i32_1 : i32, i32, i32
  }
  func.func @transform_3(%arg0: i32) -> (i32, i32, i32) {
    %c0_i32 = arith.constant 0 : i32
    %c0_i32_0 = arith.constant 0 : i32
    %c0_i32_1 = arith.constant 0 : i32
    %c0_i32_2 = arith.constant 0 : i32
    return %c0_i32, %c0_i32_0, %c0_i32_1 : i32, i32, i32
  }
  func.func @transform_4(%arg0: i32) -> (i32, i32) {
    %c0_i32 = arith.constant 0 : i32
    %c0_i32_0 = arith.constant 0 : i32
    %c0_i32_1 = arith.constant 0 : i32
    return %c0_i32, %c0_i32_0 : i32, i32
  }
  func.func @transform_5(%arg0: i32) -> (i32, i32) {
    %c0_i32 = arith.constant 0 : i32
    %c0_i32_0 = arith.constant 0 : i32
    %c0_i32_1 = arith.constant 0 : i32
    return %c0_i32, %c0_i32_0 : i32, i32
  }
  func.func @transform_6(%arg0: i32) -> (i32, i32) {
    %c0_i32 = arith.constant 0 : i32
    %c0_i32_0 = arith.constant 0 : i32
    %c0_i32_1 = arith.constant 0 : i32
    return %c0_i32, %c0_i32_0 : i32, i32
  }
  func.func @transform_7(%arg0: i32) -> (i32, i32, i32) {
    %c0_i32 = arith.constant 0 : i32
    %c0_i32_0 = arith.constant 0 : i32
    %c0_i32_1 = arith.constant 0 : i32
    return %arg0, %c0_i32, %c0_i32_0 : i32, i32, i32
  }
}

</mosaic_0001>

<llo_original>
// kernel: forward.1
$region0: #{forward.1}
  #allocation0 [shape = 'u32[]', space=smem, size = 0x4, offset = 0x4, fixed_abs, tag = 'smem constant byte address 0x4 - core index']
  #allocation1 [shape = 'u32[144,128]{1,0:T(1,128)}', space=vmem, size = 0x12000, scoped, tag = 'internal scratch']
  #allocation2 [shape = 'bf16[20,80]{1,0:T(8,128)(2,1)}', space=vmem, size = 0x1800, scoped, tag = 'scratch operand']
  #allocation3 [shape = 'bf16[2,9,128]{2,1,0:T(8,128)(2,1)}', space=vmem, size = 0x2000, scoped, tag = 'scratch operand']
  #allocation4 [shape = 'bf16[2,4,128]{2,1,0:T(4,128)(2,1)}', space=vmem, size = 0x800, scoped, tag = 'scratch operand']
  %s0 = inlined_call_operand.hbm [shape: f32[2,4,16,16], index: 0, kind: input, shape index: {}]
  %s1 = inlined_call_operand.hbm [shape: bf16[5,80,128], index: 1, kind: input, shape index: {}]
  %s2 = inlined_call_operand.hbm [shape: bf16[3,128,128], index: 2, kind: input, shape index: {}]
  %s3 = inlined_call_operand.hbm [shape: bf16[4,128,96], index: 3, kind: input, shape index: {}]
  %s4 = inlined_call_operand.vmem [shape: f32[1,128], index: 4, kind: input, shape index: {}]
  %s5 = inlined_call_operand.vmem [shape: f32[1,128], index: 5, kind: input, shape index: {}]
  %s6 = inlined_call_operand.vmem [shape: f32[1,96], index: 6, kind: input, shape index: {}]
  %s7 = inlined_call_operand.vmem [shape: f32[2,9,32], index: 7, kind: output, shape index: {}]
  %s8 = sld [smem:[#allocation0]]
  $region77: #{forward.1} parent=0
    _
  %s10 = ssub.s32 1, %s8
  %s11 = scalar_select 0, %s10, %s8
  $region1: #{forward.1} parent=0
    #allocation5 [shape = 'u8[65536]{0}', space=vmem, size = 0x10000, scoped, tag = 'input window, operand 0']
    #allocation6 [shape = 's32[2]{0}', space=sflag, size = 0x8, scoped, tag = 'scoped memory for forward.1']
    #allocation7 [shape = 'u8[102400]{0}', space=vmem, size = 0x19000, scoped, tag = 'input window, operand 1, single buffered']
    #allocation8 [shape = 's32[1]{0}', space=sflag, size = 0x4, scoped, tag = 'scoped memory for forward.1']
    #allocation9 [shape = 'u8[98304]{0}', space=vmem, size = 0x18000, scoped, tag = 'input window, operand 2, single buffered']
    #allocation10 [shape = 'u8[131072]{0}', space=vmem, size = 0x20000, scoped, tag = 'input window, operand 3, single buffered']
    #allocation11 [shape = 's32[1]{0}', space=sflag, size = 0x4, scoped, tag = 'scoped memory for forward.1']
    %12 = vsyncpa [#allocation6], 0
    %s13 = scalar_lea.sflag [#allocation6], 1
    %14 = vsyncpa %s13, 0
    %15 = vsyncpa [#allocation8], 0
    %16 = vsyncpa [#allocation11], 0
    loop: start=0, step=1, limit=4
    $region2: #{forward.1} parent=1 // loop_pre_header
      _
    $region3: #{forward.1} parent=1 // loop_header
      %s18 = sphi 0, %s22
      %p19 = scmp.ge.s32.totalorder %s18, 4
      %s28 = sphi 0, %s30
      %s31 = sphi 0, %s28
      %s32 = sphi 0, %s31
      %s48 = sphi 0, %s32
      %s52 = sphi 0, %s52
      %s54 = sphi 0, %s52
      %s55 = sphi 0, %s54
      %s69 = sphi 0, %s55
      %s73 = sphi 0, %s73
      %s75 = sphi 0, %s73
      %s76 = sphi 0, %s75
      %s90 = sphi 0, %s76
      %s94 = sphi 0, %s94
      %s96 = sphi 0, %s94
      %s97 = sphi 0, %s96
      %s111 = sphi 0, %s97
      %s115 = sphi 0, %s115
      %s117 = sphi 0, %s115
      %s118 = sphi 0, %s117
      %s132 = sphi 0, %s118
      %s136 = sphi 0, %s136
      %s138 = sphi 0, %s136
      %s139 = sphi 0, %s138
      %s153 = sphi 0, %s139
      %s157 = sphi 0, %s157
      %s159 = sphi 0, %s157
      %s160 = sphi 0, %s159
      %s174 = sphi 0, %s160
      %s180 = sphi 0, %s182
      %s183 = sphi 0, %s180
      %s184 = sphi 0, %s183
      %s200 = sphi 0, %s184
    $region4: #{forward.1} parent=1 // loop_header_branch
      %21 = sbr.rel (%p19) target = $region8
    $region5: #{forward.1} parent=1 // loop_body
      %s23 = ssub.s32 %s18, 1
      %s24 = ssub.s32 %s18, 2
      %s25 = sadd.s32 %s18, 1
      %s26 = ssub.s32 %s18, %s25
      %p27 = scmp.eq.s32.totalorder %s26, 0
      %s29 = sadd.s32 %s28, 1
      %s30 = scalar_select %p27, %s28, %s29
      %p33 = pneg %p27
      %p34 = scmp.eq.s32.totalorder %s18, 1
      %p35 = por %p33, %p34
      %p36 = scmp.ne.s32.totalorder %s28, %s31
      %p37 = scmp.eq.s32.totalorder %s18, 0
      %p38 = por %p36, %p37
      %p39 = scmp.ne.s32.totalorder %s28, %s31
      %p40 = scmp.eq.s32.totalorder %s23, 1
      %p41 = por %p39, %p40
      %p42 = scmp.ne.s32.totalorder %s31, %s32
      %p43 = scmp.eq.s32.totalorder %s23, 0
      %p44 = por %p42, %p43
      %p45 = scmp.ne.s32.totalorder %s31, %s32
      %p46 = scmp.eq.s32.totalorder %s24, 1
      %p47 = por %p45, %p46
      %p49 = scmp.ne.s32.totalorder %s32, %s48
      %p50 = scmp.eq.s32.totalorder %s24, 0
      %p51 = por %p49, %p50
      %s53 = sadd.s32 %s52, 1
      %p56 = scmp.eq.s32.totalorder %s18, 1
      %p57 = scmp.ne.s32.totalorder %s52, %s54
      %p58 = scmp.eq.s32.totalorder %s18, 0
      %p59 = por %p57, %p58
      %p60 = scmp.ne.s32.totalorder %s52, %s54
      %p61 = scmp.eq.s32.totalorder %s23, 1
      %p62 = por %p60, %p61
      %p63 = scmp.ne.s32.totalorder %s54, %s55
      %p64 = scmp.eq.s32.totalorder %s23, 0
      %p65 = por %p63, %p64
      %p66 = scmp.ne.s32.totalorder %s54, %s55
      %p67 = scmp.eq.s32.totalorder %s24, 1
      %p68 = por %p66, %p67
      %p70 = scmp.ne.s32.totalorder %s55, %s69
      %p71 = scmp.eq.s32.totalorder %s24, 0
      %p72 = por %p70, %p71
      %s74 = sadd.s32 %s73, 1
      %p77 = scmp.eq.s32.totalorder %s18, 1
      %p78 = scmp.ne.s32.totalorder %s73, %s75
      %p79 = scmp.eq.s32.totalorder %s18, 0
      %p80 = por %p78, %p79
      %p81 = scmp.ne.s32.totalorder %s73, %s75
      %p82 = scmp.eq.s32.totalorder %s23, 1
      %p83 = por %p81, %p82
      %p84 = scmp.ne.s32.totalorder %s75, %s76
      %p85 = scmp.eq.s32.totalorder %s23, 0
      %p86 = por %p84, %p85
      %p87 = scmp.ne.s32.totalorder %s75, %s76
      %p88 = scmp.eq.s32.totalorder %s24, 1
      %p89 = por %p87, %p88
      %p91 = scmp.ne.s32.totalorder %s76, %s90
      %p92 = scmp.eq.s32.totalorder %s24, 0
      %p93 = por %p91, %p92
      %s95 = sadd.s32 %s94, 1
      %p98 = scmp.eq.s32.totalorder %s18, 1
      %p99 = scmp.ne.s32.totalorder %s94, %s96
      %p100 = scmp.eq.s32.totalorder %s18, 0
      %p101 = por %p99, %p100
      %p102 = scmp.ne.s32.totalorder %s94, %s96
      %p103 = scmp.eq.s32.totalorder %s23, 1
      %p104 = por %p102, %p103
      %p105 = scmp.ne.s32.totalorder %s96, %s97
      %p106 = scmp.eq.s32.totalorder %s23, 0
      %p107 = por %p105, %p106
      %p108 = scmp.ne.s32.totalorder %s96, %s97
      %p109 = scmp.eq.s32.totalorder %s24, 1
      %p110 = por %p108, %p109
      %p112 = scmp.ne.s32.totalorder %s97, %s111
      %p113 = scmp.eq.s32.totalorder %s24, 0
      %p114 = por %p112, %p113
      %s116 = sadd.s32 %s115, 1
      %p119 = scmp.eq.s32.totalorder %s18, 1
      %p120 = scmp.ne.s32.totalorder %s115, %s117
      %p121 = scmp.eq.s32.totalorder %s18, 0
      %p122 = por %p120, %p121
      %p123 = scmp.ne.s32.totalorder %s115, %s117
      %p124 = scmp.eq.s32.totalorder %s23, 1
      %p125 = por %p123, %p124
      %p126 = scmp.ne.s32.totalorder %s117, %s118
      %p127 = scmp.eq.s32.totalorder %s23, 0
      %p128 = por %p126, %p127
      %p129 = scmp.ne.s32.totalorder %s117, %s118
      %p130 = scmp.eq.s32.totalorder %s24, 1
      %p131 = por %p129, %p130
      %p133 = scmp.ne.s32.totalorder %s118, %s132
      %p134 = scmp.eq.s32.totalorder %s24, 0
      %p135 = por %p133, %p134
      %s137 = sadd.s32 %s136, 1
      %p140 = scmp.eq.s32.totalorder %s18, 1
      %p141 = scmp.ne.s32.totalorder %s136, %s138
      %p142 = scmp.eq.s32.totalorder %s18, 0
      %p143 = por %p141, %p142
      %p144 = scmp.ne.s32.totalorder %s136, %s138
      %p145 = scmp.eq.s32.totalorder %s23, 1
      %p146 = por %p144, %p145
      %p147 = scmp.ne.s32.totalorder %s138, %s139
      %p148 = scmp.eq.s32.totalorder %s23, 0
      %p149 = por %p147, %p148
      %p150 = scmp.ne.s32.totalorder %s138, %s139
      %p151 = scmp.eq.s32.totalorder %s24, 1
      %p152 = por %p150, %p151
      %p154 = scmp.ne.s32.totalorder %s139, %s153
      %p155 = scmp.eq.s32.totalorder %s24, 0
      %p156 = por %p154, %p155
      %s158 = sadd.s32 %s157, 1
      %p161 = scmp.eq.s32.totalorder %s18, 1
      %p162 = scmp.ne.s32.totalorder %s157, %s159
      %p163 = scmp.eq.s32.totalorder %s18, 0
      %p164 = por %p162, %p163
      %p165 = scmp.ne.s32.totalorder %s157, %s159
      %p166 = scmp.eq.s32.totalorder %s23, 1
      %p167 = por %p165, %p166
      %p168 = scmp.ne.s32.totalorder %s159, %s160
      %p169 = scmp.eq.s32.totalorder %s23, 0
      %p170 = por %p168, %p169
      %p171 = scmp.ne.s32.totalorder %s159, %s160
      %p172 = scmp.eq.s32.totalorder %s24, 1
      %p173 = por %p171, %p172
      %p175 = scmp.ne.s32.totalorder %s160, %s174
      %p176 = scmp.eq.s32.totalorder %s24, 0
      %p177 = por %p175, %p176
      %s178 = ssub.s32 %s18, %s25
      %p179 = scmp.eq.s32.totalorder %s178, 0
      %s181 = sadd.s32 %s180, 1
      %s182 = scalar_select %p179, %s180, %s181
      %p185 = pneg %p179
      %p186 = scmp.eq.s32.totalorder %s18, 1
      %p187 = por %p185, %p186
      %p188 = scmp.ne.s32.totalorder %s180, %s183
      %p189 = scmp.eq.s32.totalorder %s18, 0
      %p190 = por %p188, %p189
      %p191 = scmp.ne.s32.totalorder %s180, %s183
      %p192 = scmp.eq.s32.totalorder %s23, 1
      %p193 = por %p191, %p192
      %p194 = scmp.ne.s32.totalorder %s183, %s184
      %p195 = scmp.eq.s32.totalorder %s23, 0
      %p196 = por %p194, %p195
      %p197 = scmp.ne.s32.totalorder %s183, %s184
      %p198 = scmp.eq.s32.totalorder %s24, 1
      %p199 = por %p197, %p198
      %p201 = scmp.ne.s32.totalorder %s184, %s200
      %p202 = scmp.eq.s32.totalorder %s24, 0
      %p203 = por %p201, %p202
      %p204 = scmp.le.s32.totalorder 1, %s18
      %p205 = scmp.lt.s32.totalorder %s18, 3
      %p206 = pnand %p204, %p205
      %p207 = pneg %p206
      // Predicated region
      $region9: #{forward.1} parent=5 // pred_check
        _
      $region10: #{forward.1} parent=5 // pred_check_branch
        %209 = sbr.rel (%p206) target = $region12
      $region11: #{forward.1} parent=5 // pred_region
        %s210 = ssub.s32 %s18, 1
        // Predicated region
        $region13: #{forward.1} parent=11 // pred_check
          %p211 = pneg %p65
        $region14: #{forward.1} parent=11 // pred_check_branch
          %213 = sbr.rel (%p211) target = $region16
        $region15: #{forward.1} parent=11 // pred_region
          %s215 = ssub.s32 3200, 3200
          %216 = vsyncadd [#allocation8], %s215
          %s217 = sshll.u32 [#allocation7], 4
          %s218 = int_to_ptr.vmem [resolvable:$true] %s217
          %223 = dma.hbm_to_vmem [thread:$0]  %s1, 3200, %s218, [#allocation8], 64, 64, 4
        $region16: #{forward.1} parent=11 // pred_fallthru
          _
        // Predicated region
        $region17: #{forward.1} parent=11 // pred_check
          %p224 = pneg %p86
        $region18: #{forward.1} parent=11 // pred_check_branch
          %226 = sbr.rel (%p224) target = $region20
        $region19: #{forward.1} parent=11 // pred_region
          %s228 = ssub.s32 3072, 3072
          %229 = vsyncadd [#allocation8], %s228
          %s230 = sshll.u32 [#allocation9], 4
          %s231 = int_to_ptr.vmem [resolvable:$true] %s230
          %236 = dma.hbm_to_vmem [thread:$0]  %s2, 3072, %s231, [#allocation8], 64, 64, 4
        $region20: #{forward.1} parent=11 // pred_fallthru
          _
        // Predicated region
        $region21: #{forward.1} parent=11 // pred_check
          %p237 = pneg %p107
        $region22: #{forward.1} parent=11 // pred_check_branch
          %239 = sbr.rel (%p237) target = $region24
        $region23: #{forward.1} parent=11 // pred_region
          %s241 = ssub.s32 4096, 4096
          %242 = vsyncadd [#allocation11], %s241
          %s243 = sshll.u32 [#allocation10], 4
          %s244 = int_to_ptr.vmem [resolvable:$true] %s243
          %249 = dma.hbm_to_vmem [thread:$0]  %s3, 4096, %s244, [#allocation11], 64, 64, 4
        $region24: #{forward.1} parent=11 // pred_fallthru
          _
        // Predicated region
        $region25: #{forward.1} parent=11 // pred_check
          %p250 = pneg %p128
        $region26: #{forward.1} parent=11 // pred_check_branch
          %252 = sbr.rel (%p250) target = $region28
        $region27: #{forward.1} parent=11 // pred_region
          _
        $region28: #{forward.1} parent=11 // pred_fallthru
          _
        // Predicated region
        $region29: #{forward.1} parent=11 // pred_check
          %p253 = pneg %p149
        $region30: #{forward.1} parent=11 // pred_check_branch
          %255 = sbr.rel (%p253) target = $region32
        $region31: #{forward.1} parent=11 // pred_region
          _
        $region32: #{forward.1} parent=11 // pred_fallthru
          _
        // Predicated region
        $region33: #{forward.1} parent=11 // pred_check
          %p256 = pneg %p170
        $region34: #{forward.1} parent=11 // pred_check_branch
          %258 = sbr.rel (%p256) target = $region36
        $region35: #{forward.1} parent=11 // pred_region
          _
        $region36: #{forward.1} parent=11 // pred_fallthru
          _
      $region12: #{forward.1} parent=5 // pred_fallthru
        _
      %p259 = scmp.lt.s32.totalorder %s18, 2
      // Predicated region
      $region37: #{forward.1} parent=5 // pred_check
        %p260 = pneg %p259
      $region38: #{forward.1} parent=5 // pred_check_branch
        %262 = sbr.rel (%p260) target = $region40
      $region39: #{forward.1} parent=5 // pred_region
        // Predicated region
        $region41: #{forward.1} parent=39 // pred_check
          %p263 = pneg %p38
        $region42: #{forward.1} parent=39 // pred_check_branch
          %265 = sbr.rel (%p263) target = $region44
        $region43: #{forward.1} parent=39 // pred_region
          %s266 = sand.u32 %s28, 1
          %s267 = scalar_lea.sflag [#allocation6], %s266
          %s268 = sand.u32 %s28, 1
          %s269 = smul.addr %s268, 64
          %s270 = scalar_lea.vmem [#allocation5], %s269
          %s272 = ssub.s32 1024, 1024
          %273 = vsyncadd %s267, %s272
          %s274 = smul.addr %s18, 8
          %s275 = smul.addr %s274, 128
          %s276 = scalar_lea.hbm %s0, %s275
          %s277 = sshll.u32 %s270, 4
          %s278 = int_to_ptr.vmem [resolvable:$true] %s277
          %283 = dma.hbm_to_vmem [thread:$0]  %s276, 1024, %s278, %s267, 128, 128, 8
        $region44: #{forward.1} parent=39 // pred_fallthru
          _
      $region40: #{forward.1} parent=5 // pred_fallthru
        _
      %p284 = scmp.le.s32.totalorder 1, %s18
      %p285 = scmp.lt.s32.totalorder %s18, 3
      %p286 = pnand %p284, %p285
      %p287 = pneg %p286
      // Predicated region
      $region45: #{forward.1} parent=5 // pred_check
        _
      $region46: #{forward.1} parent=5 // pred_check_branch
        %289 = sbr.rel (%p286) target = $region48
      $region47: #{forward.1} parent=5 // pred_region
        %s290 = ssub.s32 %s18, 1
        %s291 = sand.u32 %s31, 1
        %s292 = scalar_lea.sflag [#allocation6], %s291
        %s293 = sand.u32 %s31, 1
        %s294 = smul.addr %s293, 64
        %s295 = scalar_lea.vmem [#allocation5], %s294
        // Predicated region
        $region49: #{forward.1} parent=47 // pred_check
          %p296 = pneg %p44
        $region50: #{forward.1} parent=47 // pred_check_branch
          %298 = sbr.rel (%p296) target = $region52
        $region51: #{forward.1} parent=47 // pred_region
          %299 = dma.done %s292, 1024
        $region52: #{forward.1} parent=47 // pred_fallthru
          _
        // Predicated region
        $region53: #{forward.1} parent=47 // pred_check
          %p300 = pneg %p65
        $region54: #{forward.1} parent=47 // pred_check_branch
          %302 = sbr.rel (%p300) target = $region56
        $region55: #{forward.1} parent=47 // pred_region
          %303 = dma.done [#allocation8], 3200
        $region56: #{forward.1} parent=47 // pred_fallthru
          _
        // Predicated region
        $region57: #{forward.1} parent=47 // pred_check
          %p304 = pneg %p86
        $region58: #{forward.1} parent=47 // pred_check_branch
          %306 = sbr.rel (%p304) target = $region60
        $region59: #{forward.1} parent=47 // pred_region
          %307 = dma.done [#allocation8], 3072
        $region60: #{forward.1} parent=47 // pred_fallthru
          _
        // Predicated region
        $region61: #{forward.1} parent=47 // pred_check
          %p308 = pneg %p107
        $region62: #{forward.1} parent=47 // pred_check_branch
          %310 = sbr.rel (%p308) target = $region64
        $region63: #{forward.1} parent=47 // pred_region
          %311 = dma.done [#allocation11], 4096
        $region64: #{forward.1} parent=47 // pred_fallthru
          _
        %s312 = sand.u32 %s31, 1
        %s313 = scalar_lea.sflag [#allocation6], %s312
        %s314 = sand.u32 %s31, 1
        %s315 = smul.addr %s314, 64
        %s316 = scalar_lea.vmem [#allocation5], %s315
        %p317 = pneg %p44
        %p318 = pneg %p41
        %p319 = pneg %p65
        %p320 = pneg %p62
        %p321 = pneg %p86
        %p322 = pneg %p83
        %p323 = pneg %p107
        %p324 = pneg %p104
        %p325 = pneg %p128
        %p326 = pneg %p125
        %p327 = pneg %p149
        %p328 = pneg %p146
        %p329 = pneg %p170
        %p330 = pneg %p167
        %p331 = pneg %p196
        %p332 = pneg %p193
        %p333 = scmp.lt.s32.totalorder %s23, 1
        %s334 = scalar_select %p333, %s23, 1
        %s335 = smul.addr %s334, 2
        %s336 = smul.addr %s335, 8
        %s337 = scalar_lea.vmem %s7, %s336
        %p338 = scmp.lt.s32.totalorder %s23, 1
        %s339 = scalar_select %p338, %s23, 1
        %s340 = smul.addr %s339, 2
        %s341 = smul.addr %s340, 8
        %s342 = scalar_lea.vmem %s7, %s341
        %vm344 = vcmask 650240
        %345 = vst.msk [vmem:[#allocation2] sm:$0xf] %vm344, 0
        %346 = vst.msk [vmem:[#allocation2 + $0x4] sm:$0xf] %vm344, 0
        %vm347 = vcmask 648192
        %348 = vst.msk [vmem:[#allocation2 + $0x8] sm:$0x3] %vm347, 0
        %v349 = vld [vmem:[%s295] sm:$0xff]
        %v350 = vld [vmem:[%s295 + $0x8] sm:$0xff]
        %v351 = vpack.c.bf16 %v350, %v349
        %v353 = vunpack.c.l.b16 %v351
        %v354 = vunpack.c.h.b16 %v351
        %v355 = vpack.c.b16 %v353, %v353
        %v356 = vpack.c.b16 %v354, %v354
        %vm357 = vcmask 1040384
        %vm358 = vcmask 1044484
        %vm359 = vmor %vm357, %vm358
        %v360 = vrot.slane %v355, 7
        %v361 = vrot.slane %v360, 4
        %v362 = vrot.slane %v356, 7
        %v363 = vsel %vm359, %v361, %v362
        %v364 = vrot.slane %v362, 4
        %365 = vrot.lane.b32.xlu0 %v360, 2
        %v366 = vpop.permute.xlu0 %365
        %367 = vrot.lane.b32.xlu0 %v363, 2
        %v368 = vpop.permute.xlu0 %367
        %369 = vrot.lane.b32.xlu0 %v364, 2
        %v370 = vpop.permute.xlu0 %369
        %vm374 = vcmask 142353
        %375 = vst.msk [vmem:[#allocation2] sm:$0xe] %vm374, %v366
        %vm376 = vcmask 142352
        %377 = vst.msk [vmem:[#allocation2 + $0x4] sm:$0xf] %vm376, %v368
        %vm378 = vcmask 139280
        %379 = vst.msk [vmem:[#allocation2 + $0x8] sm:$0x1] %vm378, %v370
        %s380 = scalar_lea.vmem %s295, 16 [#allocation5]
        %v381 = vld [vmem:[%s380] sm:$0xff]
        %v382 = vld [vmem:[%s380 + $0x8] sm:$0xff]
        %v383 = vpack.c.bf16 %v382, %v381
        %v385 = vunpack.c.l.b16 %v383
        %v386 = vunpack.c.h.b16 %v383
        %v387 = vpack.c.b16 %v385, %v385
        %v388 = vpack.c.b16 %v386, %v386
        %v389 = vrot.slane %v387, 7
        %v390 = vrot.slane %v389, 4
        %v391 = vrot.slane %v388, 7
        %v392 = vsel %vm359, %v390, %v391
        %v393 = vrot.slane %v391, 4
        %394 = vrot.lane.b32.xlu0 %v389, 22
        %v395 = vpop.permute.xlu0 %394
        %396 = vrot.lane.b32.xlu0 %v392, 22
        %v397 = vpop.permute.xlu0 %396
        %398 = vrot.lane.b32.xlu0 %v393, 22
        %v399 = vpop.permute.xlu0 %398
        %vm403 = vcmask 306353
        %404 = vst.msk [vmem:[#allocation2] sm:$0xe] %vm403, %v395
        %vm405 = vcmask 306352
        %406 = vst.msk [vmem:[#allocation2 + $0x4] sm:$0xf] %vm405, %v397
        %vm407 = vcmask 303280
        %408 = vst.msk [vmem:[#allocation2 + $0x8] sm:$0x1] %vm407, %v399
        %s409 = scalar_lea.vmem %s295, 32 [#allocation5]
        %v410 = vld [vmem:[%s409] sm:$0xff]
        %v411 = vld [vmem:[%s409 + $0x8] sm:$0xff]
        %v412 = vpack.c.bf16 %v411, %v410
        %v414 = vunpack.c.l.b16 %v412
        %v415 = vunpack.c.h.b16 %v412
        %v416 = vpack.c.b16 %v414, %v414
        %v417 = vpack.c.b16 %v415, %v415
        %v418 = vrot.slane %v416, 7
        %v419 = vrot.slane %v418, 4
        %v420 = vrot.slane %v417, 7
        %v421 = vsel %vm359, %v419, %v420
        %v422 = vrot.slane %v420, 4
        %423 = vrot.lane.b32.xlu0 %v418, 42
        %v424 = vpop.permute.xlu0 %423
        %425 = vrot.lane.b32.xlu0 %v421, 42
        %v426 = vpop.permute.xlu0 %425
        %427 = vrot.lane.b32.xlu0 %v422, 42
        %v428 = vpop.permute.xlu0 %427
        %vm432 = vcmask 470353
        %433 = vst.msk [vmem:[#allocation2] sm:$0xe] %vm432, %v424
        %vm434 = vcmask 470352
        %435 = vst.msk [vmem:[#allocation2 + $0x4] sm:$0xf] %vm434, %v426
        %vm436 = vcmask 467280
        %437 = vst.msk [vmem:[#allocation2 + $0x8] sm:$0x1] %vm436, %v428
        %s438 = scalar_lea.vmem %s295, 48 [#allocation5]
        %v439 = vld [vmem:[%s438] sm:$0xff]
        %v440 = vld [vmem:[%s438 + $0x8] sm:$0xff]
        %v441 = vpack.c.bf16 %v440, %v439
        %v443 = vunpack.c.l.b16 %v441
        %v444 = vunpack.c.h.b16 %v441
        %v445 = vpack.c.b16 %v443, %v443
        %v446 = vpack.c.b16 %v444, %v444
        %v447 = vrot.slane %v445, 7
        %v448 = vrot.slane %v447, 4
        %v449 = vrot.slane %v446, 7
        %v450 = vsel %vm359, %v448, %v449
        %v451 = vrot.slane %v449, 4
        %452 = vrot.lane.b32.xlu0 %v447, 62
        %v453 = vpop.permute.xlu0 %452
        %454 = vrot.lane.b32.xlu0 %v450, 62
        %v455 = vpop.permute.xlu0 %454
        %456 = vrot.lane.b32.xlu0 %v451, 62
        %v457 = vpop.permute.xlu0 %456
        %vm461 = vcmask 634353
        %462 = vst.msk [vmem:[#allocation2] sm:$0xe] %vm461, %v453
        %vm463 = vcmask 634352
        %464 = vst.msk [vmem:[#allocation2 + $0x4] sm:$0xf] %vm463, %v455
        %vm465 = vcmask 631280
        %466 = vst.msk [vmem:[#allocation2 + $0x8] sm:$0x1] %vm465, %v457
        %467 = vst [vmem:[#allocation3] sm:$0xf] 0
        %vm468 = vsmask.f32 256
        %vm469 = vmand %vm357, %vm468
        %v470 = vld [vmem:[#allocation3 + $0x4] sm:$0x1]
        %v471 = vsel %vm469, 0, %v470
        %472 = vst [vmem:[#allocation3 + $0x4] sm:$0x1] %v471
        %473 = vst [vmem:[#allocation3 + $0x8] sm:$0xf] 0
        %v474 = vld [vmem:[#allocation3 + $0xc] sm:$0x1]
        %v475 = vsel %vm469, 0, %v474
        %476 = vst [vmem:[#allocation3 + $0xc] sm:$0x1] %v475
        %477 = vst [vmem:[#allocation4] sm:$0x3] 0
        %478 = vst [vmem:[#allocation4 + $0x2] sm:$0x3] 0
        %v479 = vld [vmem:[#allocation2] sm:$0xf]
        %v480 = vld [vmem:[#allocation2 + $0x4] sm:$0xf]
        %v481 = vld [vmem:[#allocation7] sm:$0xf]
        %v482 = vld [vmem:[#allocation7 + $0x4] sm:$0xf]
        %v483 = vld [vmem:[#allocation7 + $0x8] sm:$0xf]
        %v484 = vld [vmem:[#allocation7 + $0xc] sm:$0xf]
        %v485 = vld [vmem:[#allocation7 + $0x10] sm:$0xf]
        %v486 = vld [vmem:[#allocation7 + $0x14] sm:$0xf]
        %v487 = vld [vmem:[#allocation7 + $0x18] sm:$0xf]
        %v488 = vld [vmem:[#allocation7 + $0x1c] sm:$0xf]
        %v489 = vld [vmem:[#allocation7 + $0x20] sm:$0xf]
        %v490 = vld [vmem:[#allocation7 + $0x24] sm:$0xf]
        %v491 = vld [vmem:[#allocation2 + $0x8] sm:$0x1]
        %s492 = scalar_lea.vmem [#allocation7], 40
        %v493 = vld [vmem:[%s492] sm:$0xf]
        %v494 = vld [vmem:[%s492 + $0x4] sm:$0xf]
        %v495 = vld [vmem:[%s492 + $0x8] sm:$0xf]
        %v496 = vld [vmem:[%s492 + $0xc] sm:$0xf]
        %v497 = vld [vmem:[%s492 + $0x10] sm:$0xf]
        %v498 = vld [vmem:[%s492 + $0x14] sm:$0xf]
        %v499 = vld [vmem:[%s492 + $0x18] sm:$0xf]
        %v500 = vld [vmem:[%s492 + $0x1c] sm:$0xf]
        %v501 = vld [vmem:[%s492 + $0x20] sm:$0xf]
        %v502 = vld [vmem:[%s492 + $0x24] sm:$0xf]
        %v506 = vunpack.c.l.b16 %v479
        %v507 = vunpack.c.l.b16 %v480
        %v508 = vunpack.c.l.b16 %v491
        %v509 = vpack.c.b16 %v507, %v506
        %v510 = vpack.c.b16 %v508, %v508
        %vm511 = vsmask.f32 7424
        %v513 = vshrl.u32 %v509, 16
        %v515 = vshll.u32 %v509, 16
        %v517 = vrot.slane %v515, 1
        %v518 = vor.u32 %v513, %v517
        %v520 = vshll.u32 %v510, 16
        %v522 = vrot.slane %v520, 1
        %v523 = vsel %vm511, %v518, %v522
        %v534 = vunpack.c.l.b16 %v493
        %v535 = vunpack.c.l.b16 %v494
        %v536 = vunpack.c.l.b16 %v495
        %v537 = vunpack.c.l.b16 %v496
        %v538 = vunpack.c.l.b16 %v497
        %v539 = vunpack.c.l.b16 %v498
        %v540 = vunpack.c.l.b16 %v499
        %v541 = vunpack.c.l.b16 %v500
        %v542 = vunpack.c.l.b16 %v501
        %v543 = vunpack.c.l.b16 %v502
        %v544 = vpack.c.b16 %v535, %v534
        %v545 = vpack.c.b16 %v537, %v536
        %v546 = vpack.c.b16 %v539, %v538
        %v547 = vpack.c.b16 %v541, %v540
        %v548 = vpack.c.b16 %v543, %v542
        %vm554 = vcmask 654336
        %v556 = vsel %vm554, %v523, 0
        %558 = vmatprep.subr.bf16.mxu0 0
        %559 = vmatpush1.bf16.msra.mxu0 %v544
        %560 = vmatprep.subr.bf16.mxu0 0
        %561 = vmatpush1.bf16.msra.mxu0 %v545
        %562 = vmatprep.subr.bf16.mxu0 0
        %563 = vmatpush1.bf16.msra.mxu0 %v546
        %564 = vmatprep.subr.bf16.mxu0 0
        %565 = vmatpush1.bf16.msra.mxu0 %v547
        %566 = vmatprep.subr.bf16.mxu0 0
        %567 = vmatpush1.bf16.msra.mxu0 %v548
        %568 = vmatprep.subr.bf16.mxu0 0
        %569 = vmatpush1.bf16.msra.mxu0 0
        %570 = vmatprep.subr.bf16.mxu0 0
        %571 = vmatpush1.bf16.msra.mxu0 0
        %572 = vmatprep.subr.bf16.mxu0 0
        %573 = vmatpush1.bf16.msra.mxu0 0
        %574 = vmatprep.subr.bf16.mxu0 0
        %575 = vmatpush1.bf16.msra.mxu0 0
        %576 = vmatprep.subr.bf16.mxu0 0
        %577 = vmatpush1.bf16.msra.mxu0 0
        %578 = vmatprep.subr.bf16.mxu0 0
        %579 = vmatpush1.bf16.msra.mxu0 0
        %580 = vmatprep.subr.bf16.mxu0 0
        %581 = vmatpush1.bf16.msra.mxu0 0
        %582 = vmatprep.subr.bf16.mxu0 0
        %583 = vmatpush1.bf16.msra.mxu0 0
        %584 = vmatprep.subr.bf16.mxu0 0
        %585 = vmatpush1.bf16.msra.mxu0 0
        %586 = vmatprep.subr.bf16.mxu0 0
        %587 = vmatpush1.bf16.msra.mxu0 0
        %588 = vmatprep.subr.bf16.mxu0 0
        %589 = vmatpush1.bf16.msra.mxu0 0
        %590 = vmatprep.mubr.bf16.mxu0 0
        %591 = vmatmul.mubr.bf16.gmra.mrb[0].mxu0 %v556
        %v592 = vpop.f32.mrb[0].mxu0
        %v593 = vadd.f32 0.0, %v592
        %v594 = vpop.f32.mrb[0].mxu0
        %v595 = vpop.f32.mrb[0].mxu0
        %v596 = vadd.f32 0.0, %v595
        %v597 = vpop.f32.mrb[0].mxu0
        %598 = vdwg.mxu0
        %v609 = vunpack.c.l.b16 %v481
        %v610 = vunpack.c.l.b16 %v482
        %v611 = vunpack.c.l.b16 %v483
        %v612 = vunpack.c.l.b16 %v484
        %v613 = vunpack.c.l.b16 %v485
        %v614 = vunpack.c.l.b16 %v486
        %v615 = vunpack.c.l.b16 %v487
        %v616 = vunpack.c.l.b16 %v488
        %v617 = vunpack.c.l.b16 %v489
        %v618 = vunpack.c.l.b16 %v490
        %v619 = vpack.c.b16 %v610, %v609
        %v620 = vpack.c.b16 %v612, %v611
        %v621 = vpack.c.b16 %v614, %v613
        %v622 = vpack.c.b16 %v616, %v615
        %v623 = vpack.c.b16 %v618, %v617
        %v629 = vsel %vm554, %v509, 0
        %631 = vmatprep.subr.bf16.mxu0 0
        %632 = vmatpush1.bf16.msra.mxu0 %v619
        %633 = vmatprep.subr.bf16.mxu0 0
        %634 = vmatpush1.bf16.msra.mxu0 %v620
        %635 = vmatprep.subr.bf16.mxu0 0
        %636 = vmatpush1.bf16.msra.mxu0 %v621
        %637 = vmatprep.subr.bf16.mxu0 0
        %638 = vmatpush1.bf16.msra.mxu0 %v622
        %639 = vmatprep.subr.bf16.mxu0 0
        %640 = vmatpush1.bf16.msra.mxu0 %v623
        %641 = vmatprep.subr.bf16.mxu0 0
        %642 = vmatpush1.bf16.msra.mxu0 0
        %643 = vmatprep.subr.bf16.mxu0 0
        %644 = vmatpush1.bf16.msra.mxu0 0
        %645 = vmatprep.subr.bf16.mxu0 0
        %646 = vmatpush1.bf16.msra.mxu0 0
        %647 = vmatprep.subr.bf16.mxu0 0
        %648 = vmatpush1.bf16.msra.mxu0 0
        %649 = vmatprep.subr.bf16.mxu0 0
        %650 = vmatpush1.bf16.msra.mxu0 0
        %651 = vmatprep.subr.bf16.mxu0 0
        %652 = vmatpush1.bf16.msra.mxu0 0
        %653 = vmatprep.subr.bf16.mxu0 0
        %654 = vmatpush1.bf16.msra.mxu0 0
        %655 = vmatprep.subr.bf16.mxu0 0
        %656 = vmatpush1.bf16.msra.mxu0 0
        %657 = vmatprep.subr.bf16.mxu0 0
        %658 = vmatpush1.bf16.msra.mxu0 0
        %659 = vmatprep.subr.bf16.mxu0 0
        %660 = vmatpush1.bf16.msra.mxu0 0
        %661 = vmatprep.subr.bf16.mxu0 0
        %662 = vmatpush1.bf16.msra.mxu0 0
        %663 = vmatprep.mubr.bf16.mxu0 0
        %664 = vmatmul.mubr.bf16.gmra.mrb[0].mxu0 %v629
        %v665 = vpop.f32.mrb[0].mxu0
        %v666 = vadd.f32 %v593, %v665
        %v667 = vpop.f32.mrb[0].mxu0
        %v668 = vpop.f32.mrb[0].mxu0
        %v669 = vadd.f32 %v596, %v668
        %v670 = vpop.f32.mrb[0].mxu0
        %671 = vdwg.mxu0
        %v672 = vld [vmem:[#allocation2] sm:$0xe]
        %s673 = scalar_lea.vmem [#allocation7], 80
        %v674 = vld [vmem:[%s673] sm:$0xf]
        %v675 = vld [vmem:[%s673 + $0x4] sm:$0xf]
        %v676 = vld [vmem:[%s673 + $0x8] sm:$0xf]
        %v677 = vld [vmem:[%s673 + $0xc] sm:$0xf]
        %v678 = vld [vmem:[%s673 + $0x10] sm:$0xf]
        %v679 = vld [vmem:[%s673 + $0x14] sm:$0xf]
        %v680 = vld [vmem:[%s673 + $0x18] sm:$0xf]
        %v681 = vld [vmem:[%s673 + $0x1c] sm:$0xf]
        %v682 = vld [vmem:[%s673 + $0x20] sm:$0xf]
        %v683 = vld [vmem:[%s673 + $0x24] sm:$0xf]
        %v685 = vunpack.c.l.b16 %v672
        %v686 = vpack.c.b16 %v507, %v685
        %vm687 = vcmask 1046528
        %v688 = vrot.slane %v686, 1
        %v689 = vrot.slane %v510, 1
        %v690 = vsel %vm687, %v688, %v689
        %v701 = vunpack.c.l.b16 %v674
        %v702 = vunpack.c.l.b16 %v675
        %v703 = vunpack.c.l.b16 %v676
        %v704 = vunpack.c.l.b16 %v677
        %v705 = vunpack.c.l.b16 %v678
        %v706 = vunpack.c.l.b16 %v679
        %v707 = vunpack.c.l.b16 %v680
        %v708 = vunpack.c.l.b16 %v681
        %v709 = vunpack.c.l.b16 %v682
        %v710 = vunpack.c.l.b16 %v683
        %v711 = vpack.c.b16 %v702, %v701
        %v712 = vpack.c.b16 %v704, %v703
        %v713 = vpack.c.b16 %v706, %v705
        %v714 = vpack.c.b16 %v708, %v707
        %v715 = vpack.c.b16 %v710, %v709
        %v722 = vsel %vm554, %v690, 0
        %724 = vmatprep.subr.bf16.mxu0 0
        %725 = vmatpush1.bf16.msra.mxu0 %v711
        %726 = vmatprep.subr.bf16.mxu0 0
        %727 = vmatpush1.bf16.msra.mxu0 %v712
        %728 = vmatprep.subr.bf16.mxu0 0
        %729 = vmatpush1.bf16.msra.mxu0 %v713
        %730 = vmatprep.subr.bf16.mxu0 0
        %731 = vmatpush1.bf16.msra.mxu0 %v714
        %732 = vmatprep.subr.bf16.mxu0 0
        %733 = vmatpush1.bf16.msra.mxu0 %v715
        %734 = vmatprep.subr.bf16.mxu0 0
        %735 = vmatpush1.bf16.msra.mxu0 0
        %736 = vmatprep.subr.bf16.mxu0 0
        %737 = vmatpush1.bf16.msra.mxu0 0
        %738 = vmatprep.subr.bf16.mxu0 0
        %739 = vmatpush1.bf16.msra.mxu0 0
        %740 = vmatprep.subr.bf16.mxu0 0
        %741 = vmatpush1.bf16.msra.mxu0 0
        %742 = vmatprep.subr.bf16.mxu0 0
        %743 = vmatpush1.bf16.msra.mxu0 0
        %744 = vmatprep.subr.bf16.mxu0 0
        %745 = vmatpush1.bf16.msra.mxu0 0
        %746 = vmatprep.subr.bf16.mxu0 0
        %747 = vmatpush1.bf16.msra.mxu0 0
        %748 = vmatprep.subr.bf16.mxu0 0
        %749 = vmatpush1.bf16.msra.mxu0 0
        %750 = vmatprep.subr.bf16.mxu0 0
        %751 = vmatpush1.bf16.msra.mxu0 0
        %752 = vmatprep.subr.bf16.mxu0 0
        %753 = vmatpush1.bf16.msra.mxu0 0
        %754 = vmatprep.subr.bf16.mxu0 0
        %755 = vmatpush1.bf16.msra.mxu0 0
        %756 = vmatprep.mubr.bf16.mxu0 0
        %757 = vmatmul.mubr.bf16.gmra.mrb[0].mxu0 %v722
        %v758 = vpop.f32.mrb[0].mxu0
        %v759 = vadd.f32 0.0, %v758
        %v760 = vpop.f32.mrb[0].mxu0
        %v761 = vpop.f32.mrb[0].mxu0
        %v762 = vadd.f32 0.0, %v761
        %v763 = vpop.f32.mrb[0].mxu0
        %764 = vdwg.mxu0
        %v765 = vadd.f32 %v666, %v759
        %v766 = vadd.f32 %v669, %v762
        %v767 = vld [vmem:[#allocation2 + $0x8] sm:$0x3]
        %s768 = scalar_lea.vmem [#allocation7], 120
        %v769 = vld [vmem:[%s768] sm:$0xf]
        %v770 = vld [vmem:[%s768 + $0x4] sm:$0xf]
        %v771 = vld [vmem:[%s768 + $0x8] sm:$0xf]
        %v772 = vld [vmem:[%s768 + $0xc] sm:$0xf]
        %v773 = vld [vmem:[%s768 + $0x10] sm:$0xf]
        %v774 = vld [vmem:[%s768 + $0x14] sm:$0xf]
        %v775 = vld [vmem:[%s768 + $0x18] sm:$0xf]
        %v776 = vld [vmem:[%s768 + $0x1c] sm:$0xf]
        %v777 = vld [vmem:[%s768 + $0x20] sm:$0xf]
        %v778 = vld [vmem:[%s768 + $0x24] sm:$0xf]
        %v780 = vunpack.c.l.b16 %v767
        %v781 = vpack.c.b16 %v780, %v780
        %vm782 = vsmask.f32 6400
        %v784 = vshrl.u32 %v686, 16
        %v786 = vrot.slane %v784, 1
        %v787 = vshll.u32 %v686, 16
        %v789 = vrot.slane %v787, 2
        %v790 = vor.u32 %v786, %v789
        %v792 = vshrl.u32 %v781, 16
        %v794 = vrot.slane %v792, 1
        %v795 = vshll.u32 %v781, 16
        %v797 = vrot.slane %v795, 2
        %v798 = vor.u32 %v794, %v797
        %v799 = vsel %vm782, %v790, %v798
        %v810 = vunpack.c.l.b16 %v769
        %v811 = vunpack.c.l.b16 %v770
        %v812 = vunpack.c.l.b16 %v771
        %v813 = vunpack.c.l.b16 %v772
        %v814 = vunpack.c.l.b16 %v773
        %v815 = vunpack.c.l.b16 %v774
        %v816 = vunpack.c.l.b16 %v775
        %v817 = vunpack.c.l.b16 %v776
        %v818 = vunpack.c.l.b16 %v777
        %v819 = vunpack.c.l.b16 %v778
        %v820 = vpack.c.b16 %v811, %v810
        %v821 = vpack.c.b16 %v813, %v812
        %v822 = vpack.c.b16 %v815, %v814
        %v823 = vpack.c.b16 %v817, %v816
        %v824 = vpack.c.b16 %v819, %v818
        %v831 = vsel %vm554, %v799, 0
        %833 = vmatprep.subr.bf16.mxu0 0
        %834 = vmatpush1.bf16.msra.mxu0 %v820
        %835 = vmatprep.subr.bf16.mxu0 0
        %836 = vmatpush1.bf16.msra.mxu0 %v821
        %837 = vmatprep.subr.bf16.mxu0 0
        %838 = vmatpush1.bf16.msra.mxu0 %v822
        %839 = vmatprep.subr.bf16.mxu0 0
        %840 = vmatpush1.bf16.msra.mxu0 %v823
        %841 = vmatprep.subr.bf16.mxu0 0
        %842 = vmatpush1.bf16.msra.mxu0 %v824
        %843 = vmatprep.subr.bf16.mxu0 0
        %844 = vmatpush1.bf16.msra.mxu0 0
        %845 = vmatprep.subr.bf16.mxu0 0
        %846 = vmatpush1.bf16.msra.mxu0 0
        %847 = vmatprep.subr.bf16.mxu0 0
        %848 = vmatpush1.bf16.msra.mxu0 0
        %849 = vmatprep.subr.bf16.mxu0 0
        %850 = vmatpush1.bf16.msra.mxu0 0
        %851 = vmatprep.subr.bf16.mxu0 0
        %852 = vmatpush1.bf16.msra.mxu0 0
        %853 = vmatprep.subr.bf16.mxu0 0
        %854 = vmatpush1.bf16.msra.mxu0 0
        %855 = vmatprep.subr.bf16.mxu0 0
        %856 = vmatpush1.bf16.msra.mxu0 0
        %857 = vmatprep.subr.bf16.mxu0 0
        %858 = vmatpush1.bf16.msra.mxu0 0
        %859 = vmatprep.subr.bf16.mxu0 0
        %860 = vmatpush1.bf16.msra.mxu0 0
        %861 = vmatprep.subr.bf16.mxu0 0
        %862 = vmatpush1.bf16.msra.mxu0 0
        %863 = vmatprep.subr.bf16.mxu0 0
        %864 = vmatpush1.bf16.msra.mxu0 0
        %865 = vmatprep.mubr.bf16.mxu0 0
        %866 = vmatmul.mubr.bf16.gmra.mrb[0].mxu0 %v831
        %v867 = vpop.f32.mrb[0].mxu0
        %v868 = vadd.f32 0.0, %v867
        %v869 = vpop.f32.mrb[0].mxu0
        %v870 = vpop.f32.mrb[0].mxu0
        %v871 = vadd.f32 0.0, %v870
        %v872 = vpop.f32.mrb[0].mxu0
        %873 = vdwg.mxu0
        %v874 = vadd.f32 %v765, %v868
        %v875 = vadd.f32 %v766, %v871
        %v876 = vld [vmem:[#allocation2] sm:$0xc]
        %s877 = scalar_lea.vmem [#allocation7], 160
        %v878 = vld [vmem:[%s877] sm:$0xf]
        %v879 = vld [vmem:[%s877 + $0x4] sm:$0xf]
        %v880 = vld [vmem:[%s877 + $0x8] sm:$0xf]
        %v881 = vld [vmem:[%s877 + $0xc] sm:$0xf]
        %v882 = vld [vmem:[%s877 + $0x10] sm:$0xf]
        %v883 = vld [vmem:[%s877 + $0x14] sm:$0xf]
        %v884 = vld [vmem:[%s877 + $0x18] sm:$0xf]
        %v885 = vld [vmem:[%s877 + $0x1c] sm:$0xf]
        %v886 = vld [vmem:[%s877 + $0x20] sm:$0xf]
        %v887 = vld [vmem:[%s877 + $0x24] sm:$0xf]
        %v889 = vunpack.c.l.b16 %v876
        %v890 = vpack.c.b16 %v507, %v889
        %vm891 = vcmask 1045504
        %v892 = vrot.slane %v890, 2
        %v893 = vrot.slane %v781, 2
        %v894 = vsel %vm891, %v892, %v893
        %v905 = vunpack.c.l.b16 %v878
        %v906 = vunpack.c.l.b16 %v879
        %v907 = vunpack.c.l.b16 %v880
        %v908 = vunpack.c.l.b16 %v881
        %v909 = vunpack.c.l.b16 %v882
        %v910 = vunpack.c.l.b16 %v883
        %v911 = vunpack.c.l.b16 %v884
        %v912 = vunpack.c.l.b16 %v885
        %v913 = vunpack.c.l.b16 %v886
        %v914 = vunpack.c.l.b16 %v887
        %v915 = vpack.c.b16 %v906, %v905
        %v916 = vpack.c.b16 %v908, %v907
        %v917 = vpack.c.b16 %v910, %v909
        %v918 = vpack.c.b16 %v912, %v911
        %v919 = vpack.c.b16 %v914, %v913
        %v926 = vsel %vm554, %v894, 0
        %928 = vmatprep.subr.bf16.mxu0 0
        %929 = vmatpush1.bf16.msra.mxu0 %v915
        %930 = vmatprep.subr.bf16.mxu0 0
        %931 = vmatpush1.bf16.msra.mxu0 %v916
        %932 = vmatprep.subr.bf16.mxu0 0
        %933 = vmatpush1.bf16.msra.mxu0 %v917
        %934 = vmatprep.subr.bf16.mxu0 0
        %935 = vmatpush1.bf16.msra.mxu0 %v918
        %936 = vmatprep.subr.bf16.mxu0 0
        %937 = vmatpush1.bf16.msra.mxu0 %v919
        %938 = vmatprep.subr.bf16.mxu0 0
        %939 = vmatpush1.bf16.msra.mxu0 0
        %940 = vmatprep.subr.bf16.mxu0 0
        %941 = vmatpush1.bf16.msra.mxu0 0
        %942 = vmatprep.subr.bf16.mxu0 0
        %943 = vmatpush1.bf16.msra.mxu0 0
        %944 = vmatprep.subr.bf16.mxu0 0
        %945 = vmatpush1.bf16.msra.mxu0 0
        %946 = vmatprep.subr.bf16.mxu0 0
        %947 = vmatpush1.bf16.msra.mxu0 0
        %948 = vmatprep.subr.bf16.mxu0 0
        %949 = vmatpush1.bf16.msra.mxu0 0
        %950 = vmatprep.subr.bf16.mxu0 0
        %951 = vmatpush1.bf16.msra.mxu0 0
        %952 = vmatprep.subr.bf16.mxu0 0
        %953 = vmatpush1.bf16.msra.mxu0 0
        %954 = vmatprep.subr.bf16.mxu0 0
        %955 = vmatpush1.bf16.msra.mxu0 0
        %956 = vmatprep.subr.bf16.mxu0 0
        %957 = vmatpush1.bf16.msra.mxu0 0
        %958 = vmatprep.subr.bf16.mxu0 0
        %959 = vmatpush1.bf16.msra.mxu0 0
        %960 = vmatprep.mubr.bf16.mxu0 0
        %961 = vmatmul.mubr.bf16.gmra.mrb[0].mxu0 %v926
        %v962 = vpop.f32.mrb[0].mxu0
        %v963 = vadd.f32 0.0, %v962
        %v964 = vpop.f32.mrb[0].mxu0
        %v965 = vpop.f32.mrb[0].mxu0
        %v966 = vadd.f32 0.0, %v965
        %v967 = vpop.f32.mrb[0].mxu0
        %968 = vdwg.mxu0
        %v969 = vadd.f32 %v874, %v963
        %v970 = vadd.f32 %v875, %v966
        %v971 = vld [vmem:[%s4] sm:$0x1]
        %v973 = vlaneseq
        %v974 = vshrl.u32 %v973, 7
        %v975 = vsub.s32 0, %v974
        %v976 = vrot.slane %v971, %v975
        %v978 = vadd.f32 %v969, %v976
        %v979 = vadd.f32 %v970, %v976
        %v980 = vmul.f32 %v978, 0.5
        %v981 = vmul.f32 %v979, 0.5
        %v982 = vmul.f32 %v978, 0.70710677
        %v983 = vmul.f32 %v979, 0.70710677
        %vm984 = vcmp.lt.f32.partialorder %v982, 0.0
        %vm985 = vcmp.lt.f32.partialorder %v983, 0.0
        %v986 = vsel %vm984, -1.0, 1.0
        %v987 = vsel %vm985, -1.0, 1.0
        %v988 = vand.u32 2147483647, %v982
        %v989 = vand.u32 2147483647, %v983
        %v990 = vmul.f32 %v988, 0.3275911
        %v991 = vmul.f32 %v989, 0.3275911
        %v992 = vadd.f32 %v990, 1.0
        %v993 = vadd.f32 %v991, 1.0
        %v994 = vrcp.pop %v992
        %v995 = vrcp.pop %v993
        %v996 = vmul.f32 %v994, 1.0614054
        %v997 = vmul.f32 %v995, 1.0614054
        %v998 = vadd.f32 %v996, -1.4531521
        %v999 = vadd.f32 %v997, -1.4531521
        %v1000 = vmul.f32 %v998, %v994
        %v1001 = vmul.f32 %v999, %v995
        %v1002 = vadd.f32 %v1000, 1.4214138
        %v1003 = vadd.f32 %v1001, 1.4214138
        %v1004 = vmul.f32 %v1002, %v994
        %v1005 = vmul.f32 %v1003, %v995
        %v1006 = vadd.f32 %v1004, -0.28449672
        %v1007 = vadd.f32 %v1005, -0.28449672
        %v1008 = vmul.f32 %v1006, %v994
        %v1009 = vmul.f32 %v1007, %v995
        %v1010 = vadd.f32 %v1008, 0.2548296
        %v1011 = vadd.f32 %v1009, 0.2548296
        %v1012 = vmul.f32 %v1010, %v994
        %v1013 = vmul.f32 %v1011, %v995
        %v1014 = vsub.f32 0.0, %v988
        %v1015 = vsub.f32 0.0, %v989
        %v1016 = vmul.f32 %v1014, %v988
        %v1017 = vmul.f32 %v1015, %v989
        %v1018 = vmul.f32 %v1016, 1.442695
        %v1019 = vpow.pop %v1018
        %v1020 = vmul.f32 %v1017, 1.442695
        %v1021 = vpow.pop %v1020
        %v1022 = vmul.f32 %v1012, %v1019
        %v1023 = vmul.f32 %v1013, %v1021
        %v1024 = vsub.f32 1.0, %v1022
        %v1025 = vsub.f32 1.0, %v1023
        %v1026 = vmul.f32 %v986, %v1024
        %v1027 = vmul.f32 %v987, %v1025
        %v1028 = vadd.f32 %v1026, 1.0
        %v1029 = vadd.f32 %v1027, 1.0
        %v1030 = vmul.f32 %v980, %v1028
        %v1031 = vmul.f32 %v981, %v1029
        %v1032 = vpack.c.bf16 %v1031, %v1030
        %s1033 = scalar_lea.vmem [#allocation3], 8
        %v1034 = vld [vmem:[%s1033] sm:$0x1]
        %v1035 = vsel %vm469, %v1032, %v1034
        %1036 = vst [vmem:[%s1033] sm:$0x1] %v1035
        %vm1037 = vsmask.f32 7938
        %vm1038 = vmand %vm357, %vm1037
        %v1039 = vld [vmem:[#allocation3] sm:$0x1]
        %v1040 = vsel %vm1038, %v1032, %v1039
        %1041 = vst [vmem:[#allocation3] sm:$0x1] %v1040
        %v1043 = vunpack.c.l.b16 %v1032
        %v1044 = vpack.c.b16 %v1043, %v1043
        %v1046 = vshll.u32 %v1044, 16
        %v1048 = vrot.slane %v1046, 5
        %v1049 = vrot.slane %v1048, 4
        %v1051 = vld [vmem:[%s1033] sm:$0x1]
        %v1052 = vsel %vm1038, %v1049, %v1051
        %1053 = vst [vmem:[%s1033] sm:$0x1] %v1052
        %v1054 = vshrl.u32 %v1044, 16
        %v1056 = vrot.slane %v1054, 4
        %v1057 = vrot.slane %v1056, 4
        %vm1059 = vcmask 1041409
        %vm1060 = vsmask.f32 1280
        %vm1061 = vmand %vm1059, %vm1060
        %v1062 = vld [vmem:[#allocation3] sm:$0x2]
        %v1063 = vsel %vm1061, %v1057, %v1062
        %1064 = vst [vmem:[#allocation3] sm:$0x2] %v1063
        %v1065 = vrot.slane %v1044, 5
        %v1066 = vrot.slane %v1065, 4
        %v1068 = vld [vmem:[%s1033] sm:$0x2]
        %v1069 = vsel %vm1061, %v1066, %v1068
        %1070 = vst [vmem:[%s1033] sm:$0x2] %v1069
        %vm1071 = vsmask.f32 7942
        %vm1072 = vmand %vm1059, %vm1071
        %v1073 = vld [vmem:[#allocation3] sm:$0x2]
        %v1074 = vsel %vm1072, %v1066, %v1073
        %1075 = vst [vmem:[#allocation3] sm:$0x2] %v1074
        %v1076 = vrot.slane %v1046, 6
        %v1077 = vrot.slane %v1076, 4
        %v1079 = vld [vmem:[%s1033] sm:$0x2]
        %v1080 = vsel %vm1072, %v1077, %v1079
        %1081 = vst [vmem:[%s1033] sm:$0x2] %v1080
        %v1082 = vrot.slane %v1054, 5
        %v1083 = vrot.slane %v1082, 4
        %vm1085 = vcmask 1042434
        %vm1086 = vsmask.f32 2304
        %vm1087 = vmand %vm1085, %vm1086
        %v1088 = vld [vmem:[#allocation3] sm:$0x4]
        %v1089 = vsel %vm1087, %v1083, %v1088
        %1090 = vst [vmem:[#allocation3] sm:$0x4] %v1089
        %v1091 = vunpack.c.h.b16 %v1032
        %v1092 = vpack.c.b16 %v1091, %v1091
        %v1093 = vrot.slane %v1092, 6
        %v1095 = vld [vmem:[%s1033] sm:$0x4]
        %v1096 = vsel %vm1087, %v1093, %v1095
        %1097 = vst [vmem:[%s1033] sm:$0x4] %v1096
        %vm1098 = vsmask.f32 7946
        %vm1099 = vmand %vm1085, %vm1098
        %v1100 = vld [vmem:[#allocation3] sm:$0x4]
        %v1101 = vsel %vm1099, %v1093, %v1100
        %1102 = vst [vmem:[#allocation3] sm:$0x4] %v1101
        %v1104 = vshll.u32 %v1092, 16
        %v1106 = vrot.slane %v1104, 7
        %v1108 = vld [vmem:[%s1033] sm:$0x4]
        %v1109 = vsel %vm1099, %v1106, %v1108
        %1110 = vst [vmem:[%s1033] sm:$0x4] %v1109
        %v1111 = vshrl.u32 %v1092, 16
        %v1113 = vrot.slane %v1111, 6
        %vm1115 = vcmask 1043459
        %vm1116 = vsmask.f32 3328
        %vm1117 = vmand %vm1115, %vm1116
        %v1118 = vld [vmem:[#allocation3] sm:$0x8]
        %v1119 = vsel %vm1117, %v1113, %v1118
        %1120 = vst [vmem:[#allocation3] sm:$0x8] %v1119
        %v1121 = vrot.slane %v1092, 7
        %v1123 = vld [vmem:[%s1033] sm:$0x8]
        %v1124 = vsel %vm1117, %v1121, %v1123
        %1125 = vst [vmem:[%s1033] sm:$0x8] %v1124
        %vm1126 = vsmask.f32 7950
        %vm1127 = vmand %vm1115, %vm1126
        %v1128 = vld [vmem:[#allocation3] sm:$0x8]
        %v1129 = vsel %vm1127, %v1121, %v1128
        %1130 = vst [vmem:[#allocation3] sm:$0x8] %v1129
        %v1132 = vld [vmem:[%s1033] sm:$0x8]
        %v1133 = vsel %vm1127, %v1104, %v1132
        %1134 = vst [vmem:[%s1033] sm:$0x8] %v1133
        %v1135 = vrot.slane %v1111, 7
        %v1136 = vrot.slane %v1135, 4
        %v1138 = vld [vmem:[#allocation3 + $0x4] sm:$0x1]
        %v1139 = vsel %vm469, %v1136, %v1138
        %1140 = vst [vmem:[#allocation3 + $0x4] sm:$0x1] %v1139
        %v1141 = vld [vmem:[#allocation3] sm:$0xf]
        %v1142 = vld [vmem:[#allocation9] sm:$0xf]
        %v1143 = vld [vmem:[#allocation9 + $0x4] sm:$0xf]
        %v1144 = vld [vmem:[#allocation9 + $0x8] sm:$0xf]
        %v1145 = vld [vmem:[#allocation9 + $0xc] sm:$0xf]
        %v1146 = vld [vmem:[#allocation9 + $0x10] sm:$0xf]
        %v1147 = vld [vmem:[#allocation9 + $0x14] sm:$0xf]
        %v1148 = vld [vmem:[#allocation9 + $0x18] sm:$0xf]
        %v1149 = vld [vmem:[#allocation9 + $0x1c] sm:$0xf]
        %v1150 = vld [vmem:[#allocation9 + $0x20] sm:$0xf]
        %v1151 = vld [vmem:[#allocation9 + $0x24] sm:$0xf]
        %v1152 = vld [vmem:[#allocation9 + $0x28] sm:$0xf]
        %v1153 = vld [vmem:[#allocation9 + $0x2c] sm:$0xf]
        %v1154 = vld [vmem:[#allocation9 + $0x30] sm:$0xf]
        %v1155 = vld [vmem:[#allocation9 + $0x34] sm:$0xf]
        %v1156 = vld [vmem:[#allocation9 + $0x38] sm:$0xf]
        %v1157 = vld [vmem:[#allocation9 + $0x3c] sm:$0xf]
        %v1158 = vld [vmem:[%s1033] sm:$0xf]
        %s1159 = scalar_lea.vmem [#allocation9], 64
        %v1160 = vld [vmem:[%s1159] sm:$0xf]
        %v1161 = vld [vmem:[%s1159 + $0x4] sm:$0xf]
        %v1162 = vld [vmem:[%s1159 + $0x8] sm:$0xf]
        %v1163 = vld [vmem:[%s1159 + $0xc] sm:$0xf]
        %v1164 = vld [vmem:[%s1159 + $0x10] sm:$0xf]
        %v1165 = vld [vmem:[%s1159 + $0x14] sm:$0xf]
        %v1166 = vld [vmem:[%s1159 + $0x18] sm:$0xf]
        %v1167 = vld [vmem:[%s1159 + $0x1c] sm:$0xf]
        %v1168 = vld [vmem:[%s1159 + $0x20] sm:$0xf]
        %v1169 = vld [vmem:[%s1159 + $0x24] sm:$0xf]
        %v1170 = vld [vmem:[%s1159 + $0x28] sm:$0xf]
        %v1171 = vld [vmem:[%s1159 + $0x2c] sm:$0xf]
        %v1172 = vld [vmem:[%s1159 + $0x30] sm:$0xf]
        %v1173 = vld [vmem:[%s1159 + $0x34] sm:$0xf]
        %v1174 = vld [vmem:[%s1159 + $0x38] sm:$0xf]
        %v1175 = vld [vmem:[%s1159 + $0x3c] sm:$0xf]
        %v1192 = vunpack.c.l.b16 %v1160
        %v1193 = vunpack.c.l.b16 %v1161
        %v1194 = vunpack.c.l.b16 %v1162
        %v1195 = vunpack.c.l.b16 %v1163
        %v1196 = vunpack.c.l.b16 %v1164
        %v1197 = vunpack.c.l.b16 %v1165
        %v1198 = vunpack.c.l.b16 %v1166
        %v1199 = vunpack.c.l.b16 %v1167
        %v1200 = vunpack.c.l.b16 %v1168
        %v1201 = vunpack.c.l.b16 %v1169
        %v1202 = vunpack.c.l.b16 %v1170
        %v1203 = vunpack.c.l.b16 %v1171
        %v1204 = vunpack.c.l.b16 %v1172
        %v1205 = vunpack.c.l.b16 %v1173
        %v1206 = vunpack.c.l.b16 %v1174
        %v1207 = vunpack.c.l.b16 %v1175
        %v1208 = vpack.c.b16 %v1193, %v1192
        %v1209 = vpack.c.b16 %v1195, %v1194
        %v1210 = vpack.c.b16 %v1197, %v1196
        %v1211 = vpack.c.b16 %v1199, %v1198
        %v1212 = vpack.c.b16 %v1201, %v1200
        %v1213 = vpack.c.b16 %v1203, %v1202
        %v1214 = vpack.c.b16 %v1205, %v1204
        %v1215 = vpack.c.b16 %v1207, %v1206
        %1224 = vmatprep.subr.bf16.mxu0 0
        %1225 = vmatpush1.bf16.msra.mxu0 %v1208
        %1226 = vmatprep.subr.bf16.mxu0 0
        %1227 = vmatpush1.bf16.msra.mxu0 %v1209
        %1228 = vmatprep.subr.bf16.mxu0 0
        %1229 = vmatpush1.bf16.msra.mxu0 %v1210
        %1230 = vmatprep.subr.bf16.mxu0 0
        %1231 = vmatpush1.bf16.msra.mxu0 %v1211
        %1232 = vmatprep.subr.bf16.mxu0 0
        %1233 = vmatpush1.bf16.msra.mxu0 %v1212
        %1234 = vmatprep.subr.bf16.mxu0 0
        %1235 = vmatpush1.bf16.msra.mxu0 %v1213
        %1236 = vmatprep.subr.bf16.mxu0 0
        %1237 = vmatpush1.bf16.msra.mxu0 %v1214
        %1238 = vmatprep.subr.bf16.mxu0 0
        %1239 = vmatpush1.bf16.msra.mxu0 %v1215
        %1240 = vmatprep.subr.bf16.mxu0 0
        %1241 = vmatpush1.bf16.msra.mxu0 0
        %1242 = vmatprep.subr.bf16.mxu0 0
        %1243 = vmatpush1.bf16.msra.mxu0 0
        %1244 = vmatprep.subr.bf16.mxu0 0
        %1245 = vmatpush1.bf16.msra.mxu0 0
        %1246 = vmatprep.subr.bf16.mxu0 0
        %1247 = vmatpush1.bf16.msra.mxu0 0
        %1248 = vmatprep.subr.bf16.mxu0 0
        %1249 = vmatpush1.bf16.msra.mxu0 0
        %1250 = vmatprep.subr.bf16.mxu0 0
        %1251 = vmatpush1.bf16.msra.mxu0 0
        %1252 = vmatprep.subr.bf16.mxu0 0
        %1253 = vmatpush1.bf16.msra.mxu0 0
        %1254 = vmatprep.subr.bf16.mxu0 0
        %1255 = vmatpush1.bf16.msra.mxu0 0
        %1256 = vmatprep.mubr.bf16.mxu0 0
        %1257 = vmatmul.mubr.bf16.gmra.mrb[0].mxu0 %v1158
        %v1258 = vpop.f32.mrb[0].mxu0
        %v1259 = vadd.f32 0.0, %v1258
        %v1260 = vpop.f32.mrb[0].mxu0
        %v1261 = vpop.f32.mrb[0].mxu0
        %v1262 = vpop.f32.mrb[0].mxu0
        %1263 = vdwg.mxu0
        %v1280 = vunpack.c.l.b16 %v1142
        %v1281 = vunpack.c.l.b16 %v1143
        %v1282 = vunpack.c.l.b16 %v1144
        %v1283 = vunpack.c.l.b16 %v1145
        %v1284 = vunpack.c.l.b16 %v1146
        %v1285 = vunpack.c.l.b16 %v1147
        %v1286 = vunpack.c.l.b16 %v1148
        %v1287 = vunpack.c.l.b16 %v1149
        %v1288 = vunpack.c.l.b16 %v1150
        %v1289 = vunpack.c.l.b16 %v1151
        %v1290 = vunpack.c.l.b16 %v1152
        %v1291 = vunpack.c.l.b16 %v1153
        %v1292 = vunpack.c.l.b16 %v1154
        %v1293 = vunpack.c.l.b16 %v1155
        %v1294 = vunpack.c.l.b16 %v1156
        %v1295 = vunpack.c.l.b16 %v1157
        %v1296 = vpack.c.b16 %v1281, %v1280
        %v1297 = vpack.c.b16 %v1283, %v1282
        %v1298 = vpack.c.b16 %v1285, %v1284
        %v1299 = vpack.c.b16 %v1287, %v1286
        %v1300 = vpack.c.b16 %v1289, %v1288
        %v1301 = vpack.c.b16 %v1291, %v1290
        %v1302 = vpack.c.b16 %v1293, %v1292
        %v1303 = vpack.c.b16 %v1295, %v1294
        %1312 = vmatprep.subr.bf16.mxu0 0
        %1313 = vmatpush1.bf16.msra.mxu0 %v1296
        %1314 = vmatprep.subr.bf16.mxu0 0
        %1315 = vmatpush1.bf16.msra.mxu0 %v1297
        %1316 = vmatprep.subr.bf16.mxu0 0
        %1317 = vmatpush1.bf16.msra.mxu0 %v1298
        %1318 = vmatprep.subr.bf16.mxu0 0
        %1319 = vmatpush1.bf16.msra.mxu0 %v1299
        %1320 = vmatprep.subr.bf16.mxu0 0
        %1321 = vmatpush1.bf16.msra.mxu0 %v1300
        %1322 = vmatprep.subr.bf16.mxu0 0
        %1323 = vmatpush1.bf16.msra.mxu0 %v1301
        %1324 = vmatprep.subr.bf16.mxu0 0
        %1325 = vmatpush1.bf16.msra.mxu0 %v1302
        %1326 = vmatprep.subr.bf16.mxu0 0
        %1327 = vmatpush1.bf16.msra.mxu0 %v1303
        %1328 = vmatprep.subr.bf16.mxu0 0
        %1329 = vmatpush1.bf16.msra.mxu0 0
        %1330 = vmatprep.subr.bf16.mxu0 0
        %1331 = vmatpush1.bf16.msra.mxu0 0
        %1332 = vmatprep.subr.bf16.mxu0 0
        %1333 = vmatpush1.bf16.msra.mxu0 0
        %1334 = vmatprep.subr.bf16.mxu0 0
        %1335 = vmatpush1.bf16.msra.mxu0 0
        %1336 = vmatprep.subr.bf16.mxu0 0
        %1337 = vmatpush1.bf16.msra.mxu0 0
        %1338 = vmatprep.subr.bf16.mxu0 0
        %1339 = vmatpush1.bf16.msra.mxu0 0
        %1340 = vmatprep.subr.bf16.mxu0 0
        %1341 = vmatpush1.bf16.msra.mxu0 0
        %1342 = vmatprep.subr.bf16.mxu0 0
        %1343 = vmatpush1.bf16.msra.mxu0 0
        %1344 = vmatprep.mubr.bf16.mxu0 0
        %1345 = vmatmul.mubr.bf16.gmra.mrb[0].mxu0 %v1141
        %v1346 = vpop.f32.mrb[0].mxu0
        %v1347 = vadd.f32 %v1259, %v1346
        %v1348 = vpop.f32.mrb[0].mxu0
        %v1349 = vpop.f32.mrb[0].mxu0
        %v1350 = vpop.f32.mrb[0].mxu0
        %1351 = vdwg.mxu0
        %v1352 = vld [vmem:[#allocation3] sm:$0xf]
        %v1353 = vld [vmem:[#allocation3 + $0x4] sm:$0x1]
        %s1354 = scalar_lea.vmem [#allocation9], 128
        %v1355 = vld [vmem:[%s1354] sm:$0xf]
        %v1356 = vld [vmem:[%s1354 + $0x4] sm:$0xf]
        %v1357 = vld [vmem:[%s1354 + $0x8] sm:$0xf]
        %v1358 = vld [vmem:[%s1354 + $0xc] sm:$0xf]
        %v1359 = vld [vmem:[%s1354 + $0x10] sm:$0xf]
        %v1360 = vld [vmem:[%s1354 + $0x14] sm:$0xf]
        %v1361 = vld [vmem:[%s1354 + $0x18] sm:$0xf]
        %v1362 = vld [vmem:[%s1354 + $0x1c] sm:$0xf]
        %v1363 = vld [vmem:[%s1354 + $0x20] sm:$0xf]
        %v1364 = vld [vmem:[%s1354 + $0x24] sm:$0xf]
        %v1365 = vld [vmem:[%s1354 + $0x28] sm:$0xf]
        %v1366 = vld [vmem:[%s1354 + $0x2c] sm:$0xf]
        %v1367 = vld [vmem:[%s1354 + $0x30] sm:$0xf]
        %v1368 = vld [vmem:[%s1354 + $0x34] sm:$0xf]
        %v1369 = vld [vmem:[%s1354 + $0x38] sm:$0xf]
        %v1370 = vld [vmem:[%s1354 + $0x3c] sm:$0xf]
        %v1373 = vunpack.c.l.b16 %v1352
        %v1374 = vunpack.c.l.b16 %v1353
        %v1375 = vpack.c.b16 %v1374, %v1373
        %v1377 = vshrl.u32 %v1375, 16
        %v1379 = vshll.u32 %v1375, 16
        %v1381 = vrot.slane %v1379, 1
        %v1382 = vor.u32 %v1377, %v1381
        %v1400 = vunpack.c.l.b16 %v1355
        %v1401 = vunpack.c.l.b16 %v1356
        %v1402 = vunpack.c.l.b16 %v1357
        %v1403 = vunpack.c.l.b16 %v1358
        %v1404 = vunpack.c.l.b16 %v1359
        %v1405 = vunpack.c.l.b16 %v1360
        %v1406 = vunpack.c.l.b16 %v1361
        %v1407 = vunpack.c.l.b16 %v1362
        %v1408 = vunpack.c.l.b16 %v1363
        %v1409 = vunpack.c.l.b16 %v1364
        %v1410 = vunpack.c.l.b16 %v1365
        %v1411 = vunpack.c.l.b16 %v1366
        %v1412 = vunpack.c.l.b16 %v1367
        %v1413 = vunpack.c.l.b16 %v1368
        %v1414 = vunpack.c.l.b16 %v1369
        %v1415 = vunpack.c.l.b16 %v1370
        %v1416 = vpack.c.b16 %v1401, %v1400
        %v1417 = vpack.c.b16 %v1403, %v1402
        %v1418 = vpack.c.b16 %v1405, %v1404
        %v1419 = vpack.c.b16 %v1407, %v1406
        %v1420 = vpack.c.b16 %v1409, %v1408
        %v1421 = vpack.c.b16 %v1411, %v1410
        %v1422 = vpack.c.b16 %v1413, %v1412
        %v1423 = vpack.c.b16 %v1415, %v1414
        %1432 = vmatprep.subr.bf16.mxu0 0
        %1433 = vmatpush1.bf16.msra.mxu0 %v1416
        %1434 = vmatprep.subr.bf16.mxu0 0
        %1435 = vmatpush1.bf16.msra.mxu0 %v1417
        %1436 = vmatprep.subr.bf16.mxu0 0
        %1437 = vmatpush1.bf16.msra.mxu0 %v1418
        %1438 = vmatprep.subr.bf16.mxu0 0
        %1439 = vmatpush1.bf16.msra.mxu0 %v1419
        %1440 = vmatprep.subr.bf16.mxu0 0
        %1441 = vmatpush1.bf16.msra.mxu0 %v1420
        %1442 = vmatprep.subr.bf16.mxu0 0
        %1443 = vmatpush1.bf16.msra.mxu0 %v1421
        %1444 = vmatprep.subr.bf16.mxu0 0
        %1445 = vmatpush1.bf16.msra.mxu0 %v1422
        %1446 = vmatprep.subr.bf16.mxu0 0
        %1447 = vmatpush1.bf16.msra.mxu0 %v1423
        %1448 = vmatprep.subr.bf16.mxu0 0
        %1449 = vmatpush1.bf16.msra.mxu0 0
        %1450 = vmatprep.subr.bf16.mxu0 0
        %1451 = vmatpush1.bf16.msra.mxu0 0
        %1452 = vmatprep.subr.bf16.mxu0 0
        %1453 = vmatpush1.bf16.msra.mxu0 0
        %1454 = vmatprep.subr.bf16.mxu0 0
        %1455 = vmatpush1.bf16.msra.mxu0 0
        %1456 = vmatprep.subr.bf16.mxu0 0
        %1457 = vmatpush1.bf16.msra.mxu0 0
        %1458 = vmatprep.subr.bf16.mxu0 0
        %1459 = vmatpush1.bf16.msra.mxu0 0
        %1460 = vmatprep.subr.bf16.mxu0 0
        %1461 = vmatpush1.bf16.msra.mxu0 0
        %1462 = vmatprep.subr.bf16.mxu0 0
        %1463 = vmatpush1.bf16.msra.mxu0 0
        %1464 = vmatprep.mubr.bf16.mxu0 0
        %1465 = vmatmul.mubr.bf16.gmra.mrb[0].mxu0 %v1382
        %v1466 = vpop.f32.mrb[0].mxu0
        %v1467 = vadd.f32 0.0, %v1466
        %v1468 = vpop.f32.mrb[0].mxu0
        %v1469 = vpop.f32.mrb[0].mxu0
        %v1470 = vpop.f32.mrb[0].mxu0
        %1471 = vdwg.mxu0
        %v1472 = vadd.f32 %v1347, %v1467
        %v1473 = vld [vmem:[%s5] sm:$0x1]
        %v1475 = vlaneseq
        %v1476 = vshrl.u32 %v1475, 7
        %v1477 = vsub.s32 0, %v1476
        %v1478 = vrot.slane %v1473, %v1477
        %v1480 = vadd.f32 %v1472, %v1478
        %v1481 = vmul.f32 %v1480, 0.5
        %v1482 = vmul.f32 %v1480, 0.70710677
        %vm1483 = vcmp.lt.f32.partialorder %v1482, 0.0
        %v1484 = vsel %vm1483, -1.0, 1.0
        %v1485 = vand.u32 2147483647, %v1482
        %v1486 = vmul.f32 %v1485, 0.3275911
        %v1487 = vadd.f32 %v1486, 1.0
        %v1488 = vrcp.pop %v1487
        %v1489 = vmul.f32 %v1488, 1.0614054
        %v1490 = vadd.f32 %v1489, -1.4531521
        %v1491 = vmul.f32 %v1490, %v1488
        %v1492 = vadd.f32 %v1491, 1.4214138
        %v1493 = vmul.f32 %v1492, %v1488
        %v1494 = vadd.f32 %v1493, -0.28449672
        %v1495 = vmul.f32 %v1494, %v1488
        %v1496 = vadd.f32 %v1495, 0.2548296
        %v1497 = vmul.f32 %v1496, %v1488
        %v1498 = vsub.f32 0.0, %v1485
        %v1499 = vmul.f32 %v1498, %v1485
        %v1500 = vmul.f32 %v1499, 1.442695
        %v1501 = vpow.pop %v1500
        %v1502 = vmul.f32 %v1497, %v1501
        %v1503 = vsub.f32 1.0, %v1502
        %v1504 = vmul.f32 %v1484, %v1503
        %v1505 = vadd.f32 %v1504, 1.0
        %v1506 = vmul.f32 %v1481, %v1505
        %v1507 = vpack.c.bf16 %v1506, %v1506
        %v1508 = vld [vmem:[#allocation4] sm:$0x1]
        %v1509 = vsel %vm469, %v1507, %v1508
        %1510 = vst [vmem:[#allocation4] sm:$0x1] %v1509
        %v1513 = vunpack.c.l.s4 1983009808
        %v1514 = vunpack.c.0.s8 %v1513
        %v1515 = vlaneseq
        %v1516 = vshrl.u32 %v1515, 7
        %v1517 = vsub.s32 %v1514, %v1516
        %v1518 = vrot.slane %v1507, %v1517
        %v1520 = vshrl.u32 %v1518, 16
        %v1522 = vrot.slane %v1520, 6
        %v1523 = vrot.slane %v1522, 2
        %s1525 = scalar_lea.vmem [#allocation4], 2
        %v1526 = vld [vmem:[%s1525] sm:$0x1]
        %v1527 = vsel %vm469, %v1523, %v1526
        %1528 = vst [vmem:[%s1525] sm:$0x1] %v1527
        %v1529 = vshll.u32 %v1518, 16
        %v1531 = vrot.slane %v1529, 7
        %v1532 = vrot.slane %v1531, 2
        %v1534 = vld [vmem:[#allocation4] sm:$0x1]
        %v1535 = vsel %vm1038, %v1532, %v1534
        %1536 = vst [vmem:[#allocation4] sm:$0x1] %v1535
        %v1537 = vrot.slane %v1518, 7
        %v1538 = vrot.slane %v1537, 2
        %v1540 = vld [vmem:[%s1525] sm:$0x1]
        %v1541 = vsel %vm1038, %v1538, %v1540
        %1542 = vst [vmem:[%s1525] sm:$0x1] %v1541
        %v1543 = vcombine.high %v1518, %v1518
        %v1544 = vrot.slane %v1543, 7
        %v1546 = vld [vmem:[#allocation4] sm:$0x2]
        %v1547 = vsel %vm1061, %v1544, %v1546
        %1548 = vst [vmem:[#allocation4] sm:$0x2] %v1547
        %v1550 = vshrl.u32 %v1543, 16
        %v1552 = vrot.slane %v1550, 7
        %v1554 = vld [vmem:[%s1525] sm:$0x2]
        %v1555 = vsel %vm1061, %v1552, %v1554
        %1556 = vst [vmem:[%s1525] sm:$0x2] %v1555
        %v1557 = vshll.u32 %v1543, 16
        %v1560 = vld [vmem:[#allocation4] sm:$0x2]
        %v1561 = vsel %vm1072, %v1557, %v1560
        %1562 = vst [vmem:[#allocation4] sm:$0x2] %v1561
        %v1564 = vld [vmem:[%s1525] sm:$0x2]
        %v1565 = vsel %vm1072, %v1543, %v1564
        %1566 = vst [vmem:[%s1525] sm:$0x2] %v1565
        %v1567 = vld [vmem:[#allocation4] sm:$0x3]
        %v1568 = vld [vmem:[#allocation10] sm:$0xf]
        %v1569 = vld [vmem:[#allocation10 + $0x4] sm:$0xf]
        %v1570 = vld [vmem:[#allocation10 + $0x8] sm:$0xf]
        %v1571 = vld [vmem:[#allocation10 + $0xc] sm:$0xf]
        %v1572 = vld [vmem:[#allocation10 + $0x10] sm:$0xf]
        %v1573 = vld [vmem:[#allocation10 + $0x14] sm:$0xf]
        %v1574 = vld [vmem:[#allocation10 + $0x18] sm:$0xf]
        %v1575 = vld [vmem:[#allocation10 + $0x1c] sm:$0xf]
        %v1576 = vld [vmem:[#allocation10 + $0x20] sm:$0xf]
        %v1577 = vld [vmem:[#allocation10 + $0x24] sm:$0xf]
        %v1578 = vld [vmem:[#allocation10 + $0x28] sm:$0xf]
        %v1579 = vld [vmem:[#allocation10 + $0x2c] sm:$0xf]
        %v1580 = vld [vmem:[#allocation10 + $0x30] sm:$0xf]
        %v1581 = vld [vmem:[#allocation10 + $0x34] sm:$0xf]
        %v1582 = vld [vmem:[#allocation10 + $0x38] sm:$0xf]
        %v1583 = vld [vmem:[#allocation10 + $0x3c] sm:$0xf]
        %v1584 = vld [vmem:[%s1525] sm:$0x3]
        %s1585 = scalar_lea.vmem [#allocation10], 64
        %v1586 = vld [vmem:[%s1585] sm:$0xf]
        %v1587 = vld [vmem:[%s1585 + $0x4] sm:$0xf]
        %v1588 = vld [vmem:[%s1585 + $0x8] sm:$0xf]
        %v1589 = vld [vmem:[%s1585 + $0xc] sm:$0xf]
        %v1590 = vld [vmem:[%s1585 + $0x10] sm:$0xf]
        %v1591 = vld [vmem:[%s1585 + $0x14] sm:$0xf]
        %v1592 = vld [vmem:[%s1585 + $0x18] sm:$0xf]
        %v1593 = vld [vmem:[%s1585 + $0x1c] sm:$0xf]
        %v1594 = vld [vmem:[%s1585 + $0x20] sm:$0xf]
        %v1595 = vld [vmem:[%s1585 + $0x24] sm:$0xf]
        %v1596 = vld [vmem:[%s1585 + $0x28] sm:$0xf]
        %v1597 = vld [vmem:[%s1585 + $0x2c] sm:$0xf]
        %v1598 = vld [vmem:[%s1585 + $0x30] sm:$0xf]
        %v1599 = vld [vmem:[%s1585 + $0x34] sm:$0xf]
        %v1600 = vld [vmem:[%s1585 + $0x38] sm:$0xf]
        %v1601 = vld [vmem:[%s1585 + $0x3c] sm:$0xf]
        %v1618 = vunpack.c.l.b16 %v1586
        %v1619 = vunpack.c.l.b16 %v1587
        %v1620 = vunpack.c.l.b16 %v1588
        %v1621 = vunpack.c.l.b16 %v1589
        %v1622 = vunpack.c.l.b16 %v1590
        %v1623 = vunpack.c.l.b16 %v1591
        %v1624 = vunpack.c.l.b16 %v1592
        %v1625 = vunpack.c.l.b16 %v1593
        %v1626 = vunpack.c.l.b16 %v1594
        %v1627 = vunpack.c.l.b16 %v1595
        %v1628 = vunpack.c.l.b16 %v1596
        %v1629 = vunpack.c.l.b16 %v1597
        %v1630 = vunpack.c.l.b16 %v1598
        %v1631 = vunpack.c.l.b16 %v1599
        %v1632 = vunpack.c.l.b16 %v1600
        %v1633 = vunpack.c.l.b16 %v1601
        %v1634 = vpack.c.b16 %v1619, %v1618
        %v1635 = vpack.c.b16 %v1621, %v1620
        %v1636 = vpack.c.b16 %v1623, %v1622
        %v1637 = vpack.c.b16 %v1625, %v1624
        %v1638 = vpack.c.b16 %v1627, %v1626
        %v1639 = vpack.c.b16 %v1629, %v1628
        %v1640 = vpack.c.b16 %v1631, %v1630
        %v1641 = vpack.c.b16 %v1633, %v1632
        %1650 = vmatprep.subr.bf16.mxu0 0
        %1651 = vmatpush1.bf16.msra.mxu0 %v1634
        %1652 = vmatprep.subr.bf16.mxu0 0
        %1653 = vmatpush1.bf16.msra.mxu0 %v1635
        %1654 = vmatprep.subr.bf16.mxu0 0
        %1655 = vmatpush1.bf16.msra.mxu0 %v1636
        %1656 = vmatprep.subr.bf16.mxu0 0
        %1657 = vmatpush1.bf16.msra.mxu0 %v1637
        %1658 = vmatprep.subr.bf16.mxu0 0
        %1659 = vmatpush1.bf16.msra.mxu0 %v1638
        %1660 = vmatprep.subr.bf16.mxu0 0
        %1661 = vmatpush1.bf16.msra.mxu0 %v1639
        %1662 = vmatprep.subr.bf16.mxu0 0
        %1663 = vmatpush1.bf16.msra.mxu0 %v1640
        %1664 = vmatprep.subr.bf16.mxu0 0
        %1665 = vmatpush1.bf16.msra.mxu0 %v1641
        %1666 = vmatprep.subr.bf16.mxu0 0
        %1667 = vmatpush1.bf16.msra.mxu0 0
        %1668 = vmatprep.subr.bf16.mxu0 0
        %1669 = vmatpush1.bf16.msra.mxu0 0
        %1670 = vmatprep.subr.bf16.mxu0 0
        %1671 = vmatpush1.bf16.msra.mxu0 0
        %1672 = vmatprep.subr.bf16.mxu0 0
        %1673 = vmatpush1.bf16.msra.mxu0 0
        %1674 = vmatprep.subr.bf16.mxu0 0
        %1675 = vmatpush1.bf16.msra.mxu0 0
        %1676 = vmatprep.subr.bf16.mxu0 0
        %1677 = vmatpush1.bf16.msra.mxu0 0
        %1678 = vmatprep.subr.bf16.mxu0 0
        %1679 = vmatpush1.bf16.msra.mxu0 0
        %1680 = vmatprep.subr.bf16.mxu0 0
        %1681 = vmatpush1.bf16.msra.mxu0 0
        %1682 = vmatprep.mubr.bf16.mxu0 0
        %1683 = vmatmul.mubr.bf16.gmra.mrb[0].mxu0 %v1584
        %v1684 = vpop.f32.mrb[0].mxu0
        %v1685 = vadd.f32 0.0, %v1684
        %v1686 = vpop.f32.mrb[0].mxu0
        %v1687 = vpop.f32.mrb[0].mxu0
        %v1688 = vpop.f32.mrb[0].mxu0
        %1689 = vdwg.mxu0
        %v1706 = vunpack.c.l.b16 %v1568
        %v1707 = vunpack.c.l.b16 %v1569
        %v1708 = vunpack.c.l.b16 %v1570
        %v1709 = vunpack.c.l.b16 %v1571
        %v1710 = vunpack.c.l.b16 %v1572
        %v1711 = vunpack.c.l.b16 %v1573
        %v1712 = vunpack.c.l.b16 %v1574
        %v1713 = vunpack.c.l.b16 %v1575
        %v1714 = vunpack.c.l.b16 %v1576
        %v1715 = vunpack.c.l.b16 %v1577
        %v1716 = vunpack.c.l.b16 %v1578
        %v1717 = vunpack.c.l.b16 %v1579
        %v1718 = vunpack.c.l.b16 %v1580
        %v1719 = vunpack.c.l.b16 %v1581
        %v1720 = vunpack.c.l.b16 %v1582
        %v1721 = vunpack.c.l.b16 %v1583
        %v1722 = vpack.c.b16 %v1707, %v1706
        %v1723 = vpack.c.b16 %v1709, %v1708
        %v1724 = vpack.c.b16 %v1711, %v1710
        %v1725 = vpack.c.b16 %v1713, %v1712
        %v1726 = vpack.c.b16 %v1715, %v1714
        %v1727 = vpack.c.b16 %v1717, %v1716
        %v1728 = vpack.c.b16 %v1719, %v1718
        %v1729 = vpack.c.b16 %v1721, %v1720
        %1738 = vmatprep.subr.bf16.mxu0 0
        %1739 = vmatpush1.bf16.msra.mxu0 %v1722
        %1740 = vmatprep.subr.bf16.mxu0 0
        %1741 = vmatpush1.bf16.msra.mxu0 %v1723
        %1742 = vmatprep.subr.bf16.mxu0 0
        %1743 = vmatpush1.bf16.msra.mxu0 %v1724
        %1744 = vmatprep.subr.bf16.mxu0 0
        %1745 = vmatpush1.bf16.msra.mxu0 %v1725
        %1746 = vmatprep.subr.bf16.mxu0 0
        %1747 = vmatpush1.bf16.msra.mxu0 %v1726
        %1748 = vmatprep.subr.bf16.mxu0 0
        %1749 = vmatpush1.bf16.msra.mxu0 %v1727
        %1750 = vmatprep.subr.bf16.mxu0 0
        %1751 = vmatpush1.bf16.msra.mxu0 %v1728
        %1752 = vmatprep.subr.bf16.mxu0 0
        %1753 = vmatpush1.bf16.msra.mxu0 %v1729
        %1754 = vmatprep.subr.bf16.mxu0 0
        %1755 = vmatpush1.bf16.msra.mxu0 0
        %1756 = vmatprep.subr.bf16.mxu0 0
        %1757 = vmatpush1.bf16.msra.mxu0 0
        %1758 = vmatprep.subr.bf16.mxu0 0
        %1759 = vmatpush1.bf16.msra.mxu0 0
        %1760 = vmatprep.subr.bf16.mxu0 0
        %1761 = vmatpush1.bf16.msra.mxu0 0
        %1762 = vmatprep.subr.bf16.mxu0 0
        %1763 = vmatpush1.bf16.msra.mxu0 0
        %1764 = vmatprep.subr.bf16.mxu0 0
        %1765 = vmatpush1.bf16.msra.mxu0 0
        %1766 = vmatprep.subr.bf16.mxu0 0
        %1767 = vmatpush1.bf16.msra.mxu0 0
        %1768 = vmatprep.subr.bf16.mxu0 0
        %1769 = vmatpush1.bf16.msra.mxu0 0
        %1770 = vmatprep.mubr.bf16.mxu0 0
        %1771 = vmatmul.mubr.bf16.gmra.mrb[0].mxu0 %v1567
        %v1772 = vpop.f32.mrb[0].mxu0
        %v1773 = vadd.f32 %v1685, %v1772
        %v1774 = vpop.f32.mrb[0].mxu0
        %v1775 = vpop.f32.mrb[0].mxu0
        %v1776 = vpop.f32.mrb[0].mxu0
        %1777 = vdwg.mxu0
        %s1778 = scalar_lea.vmem [#allocation10], 128
        %v1779 = vld [vmem:[%s1778] sm:$0xf]
        %v1780 = vld [vmem:[%s1778 + $0x4] sm:$0xf]
        %v1781 = vld [vmem:[%s1778 + $0x8] sm:$0xf]
        %v1782 = vld [vmem:[%s1778 + $0xc] sm:$0xf]
        %v1783 = vld [vmem:[%s1778 + $0x10] sm:$0xf]
        %v1784 = vld [vmem:[%s1778 + $0x14] sm:$0xf]
        %v1785 = vld [vmem:[%s1778 + $0x18] sm:$0xf]
        %v1786 = vld [vmem:[%s1778 + $0x1c] sm:$0xf]
        %v1787 = vld [vmem:[%s1778 + $0x20] sm:$0xf]
        %v1788 = vld [vmem:[%s1778 + $0x24] sm:$0xf]
        %v1789 = vld [vmem:[%s1778 + $0x28] sm:$0xf]
        %v1790 = vld [vmem:[%s1778 + $0x2c] sm:$0xf]
        %v1791 = vld [vmem:[%s1778 + $0x30] sm:$0xf]
        %v1792 = vld [vmem:[%s1778 + $0x34] sm:$0xf]
        %v1793 = vld [vmem:[%s1778 + $0x38] sm:$0xf]
        %v1794 = vld [vmem:[%s1778 + $0x3c] sm:$0xf]
        %v1797 = vunpack.c.l.s4 1983009808
        %v1798 = vunpack.c.0.s8 %v1797
        %v1799 = vlaneseq
        %v1800 = vshrl.u32 %v1799, 7
        %v1801 = vsub.s32 %v1798, %v1800
        %v1802 = vrot.slane %v1567, %v1801
        %v1804 = vshrl.u32 %v1802, 16
        %v1806 = vshll.u32 %v1802, 16
        %v1808 = vrot.slane %v1806, 1
        %v1809 = vor.u32 %v1804, %v1808
        %v1827 = vunpack.c.l.b16 %v1779
        %v1828 = vunpack.c.l.b16 %v1780
        %v1829 = vunpack.c.l.b16 %v1781
        %v1830 = vunpack.c.l.b16 %v1782
        %v1831 = vunpack.c.l.b16 %v1783
        %v1832 = vunpack.c.l.b16 %v1784
        %v1833 = vunpack.c.l.b16 %v1785
        %v1834 = vunpack.c.l.b16 %v1786
        %v1835 = vunpack.c.l.b16 %v1787
        %v1836 = vunpack.c.l.b16 %v1788
        %v1837 = vunpack.c.l.b16 %v1789
        %v1838 = vunpack.c.l.b16 %v1790
        %v1839 = vunpack.c.l.b16 %v1791
        %v1840 = vunpack.c.l.b16 %v1792
        %v1841 = vunpack.c.l.b16 %v1793
        %v1842 = vunpack.c.l.b16 %v1794
        %v1843 = vpack.c.b16 %v1828, %v1827
        %v1844 = vpack.c.b16 %v1830, %v1829
        %v1845 = vpack.c.b16 %v1832, %v1831
        %v1846 = vpack.c.b16 %v1834, %v1833
        %v1847 = vpack.c.b16 %v1836, %v1835
        %v1848 = vpack.c.b16 %v1838, %v1837
        %v1849 = vpack.c.b16 %v1840, %v1839
        %v1850 = vpack.c.b16 %v1842, %v1841
        %1859 = vmatprep.subr.bf16.mxu0 0
        %1860 = vmatpush1.bf16.msra.mxu0 %v1843
        %1861 = vmatprep.subr.bf16.mxu0 0
        %1862 = vmatpush1.bf16.msra.mxu0 %v1844
        %1863 = vmatprep.subr.bf16.mxu0 0
        %1864 = vmatpush1.bf16.msra.mxu0 %v1845
        %1865 = vmatprep.subr.bf16.mxu0 0
        %1866 = vmatpush1.bf16.msra.mxu0 %v1846
        %1867 = vmatprep.subr.bf16.mxu0 0
        %1868 = vmatpush1.bf16.msra.mxu0 %v1847
        %1869 = vmatprep.subr.bf16.mxu0 0
        %1870 = vmatpush1.bf16.msra.mxu0 %v1848
        %1871 = vmatprep.subr.bf16.mxu0 0
        %1872 = vmatpush1.bf16.msra.mxu0 %v1849
        %1873 = vmatprep.subr.bf16.mxu0 0
        %1874 = vmatpush1.bf16.msra.mxu0 %v1850
        %1875 = vmatprep.subr.bf16.mxu0 0
        %1876 = vmatpush1.bf16.msra.mxu0 0
        %1877 = vmatprep.subr.bf16.mxu0 0
        %1878 = vmatpush1.bf16.msra.mxu0 0
        %1879 = vmatprep.subr.bf16.mxu0 0
        %1880 = vmatpush1.bf16.msra.mxu0 0
        %1881 = vmatprep.subr.bf16.mxu0 0
        %1882 = vmatpush1.bf16.msra.mxu0 0
        %1883 = vmatprep.subr.bf16.mxu0 0
        %1884 = vmatpush1.bf16.msra.mxu0 0
        %1885 = vmatprep.subr.bf16.mxu0 0
        %1886 = vmatpush1.bf16.msra.mxu0 0
        %1887 = vmatprep.subr.bf16.mxu0 0
        %1888 = vmatpush1.bf16.msra.mxu0 0
        %1889 = vmatprep.subr.bf16.mxu0 0
        %1890 = vmatpush1.bf16.msra.mxu0 0
        %1891 = vmatprep.mubr.bf16.mxu0 0
        %1892 = vmatmul.mubr.bf16.gmra.mrb[0].mxu0 %v1809
        %v1893 = vpop.f32.mrb[0].mxu0
        %v1894 = vadd.f32 0.0, %v1893
        %v1895 = vpop.f32.mrb[0].mxu0
        %v1896 = vpop.f32.mrb[0].mxu0
        %v1897 = vpop.f32.mrb[0].mxu0
        %1898 = vdwg.mxu0
        %v1899 = vadd.f32 %v1773, %v1894
        %v1900 = vld [vmem:[%s1525] sm:$0x3]
        %s1901 = scalar_lea.vmem [#allocation10], 192
        %v1902 = vld [vmem:[%s1901] sm:$0xf]
        %v1903 = vld [vmem:[%s1901 + $0x4] sm:$0xf]
        %v1904 = vld [vmem:[%s1901 + $0x8] sm:$0xf]
        %v1905 = vld [vmem:[%s1901 + $0xc] sm:$0xf]
        %v1906 = vld [vmem:[%s1901 + $0x10] sm:$0xf]
        %v1907 = vld [vmem:[%s1901 + $0x14] sm:$0xf]
        %v1908 = vld [vmem:[%s1901 + $0x18] sm:$0xf]
        %v1909 = vld [vmem:[%s1901 + $0x1c] sm:$0xf]
        %v1910 = vld [vmem:[%s1901 + $0x20] sm:$0xf]
        %v1911 = vld [vmem:[%s1901 + $0x24] sm:$0xf]
        %v1912 = vld [vmem:[%s1901 + $0x28] sm:$0xf]
        %v1913 = vld [vmem:[%s1901 + $0x2c] sm:$0xf]
        %v1914 = vld [vmem:[%s1901 + $0x30] sm:$0xf]
        %v1915 = vld [vmem:[%s1901 + $0x34] sm:$0xf]
        %v1916 = vld [vmem:[%s1901 + $0x38] sm:$0xf]
        %v1917 = vld [vmem:[%s1901 + $0x3c] sm:$0xf]
        %v1920 = vunpack.c.l.s4 1983009808
        %v1921 = vunpack.c.0.s8 %v1920
        %v1922 = vlaneseq
        %v1923 = vshrl.u32 %v1922, 7
        %v1924 = vsub.s32 %v1921, %v1923
        %v1925 = vrot.slane %v1900, %v1924
        %v1927 = vshrl.u32 %v1925, 16
        %v1929 = vshll.u32 %v1925, 16
        %v1931 = vrot.slane %v1929, 1
        %v1932 = vor.u32 %v1927, %v1931
        %v1950 = vunpack.c.l.b16 %v1902
        %v1951 = vunpack.c.l.b16 %v1903
        %v1952 = vunpack.c.l.b16 %v1904
        %v1953 = vunpack.c.l.b16 %v1905
        %v1954 = vunpack.c.l.b16 %v1906
        %v1955 = vunpack.c.l.b16 %v1907
        %v1956 = vunpack.c.l.b16 %v1908
        %v1957 = vunpack.c.l.b16 %v1909
        %v1958 = vunpack.c.l.b16 %v1910
        %v1959 = vunpack.c.l.b16 %v1911
        %v1960 = vunpack.c.l.b16 %v1912
        %v1961 = vunpack.c.l.b16 %v1913
        %v1962 = vunpack.c.l.b16 %v1914
        %v1963 = vunpack.c.l.b16 %v1915
        %v1964 = vunpack.c.l.b16 %v1916
        %v1965 = vunpack.c.l.b16 %v1917
        %v1966 = vpack.c.b16 %v1951, %v1950
        %v1967 = vpack.c.b16 %v1953, %v1952
        %v1968 = vpack.c.b16 %v1955, %v1954
        %v1969 = vpack.c.b16 %v1957, %v1956
        %v1970 = vpack.c.b16 %v1959, %v1958
        %v1971 = vpack.c.b16 %v1961, %v1960
        %v1972 = vpack.c.b16 %v1963, %v1962
        %v1973 = vpack.c.b16 %v1965, %v1964
        %1982 = vmatprep.subr.bf16.mxu0 0
        %1983 = vmatpush1.bf16.msra.mxu0 %v1966
        %1984 = vmatprep.subr.bf16.mxu0 0
        %1985 = vmatpush1.bf16.msra.mxu0 %v1967
        %1986 = vmatprep.subr.bf16.mxu0 0
        %1987 = vmatpush1.bf16.msra.mxu0 %v1968
        %1988 = vmatprep.subr.bf16.mxu0 0
        %1989 = vmatpush1.bf16.msra.mxu0 %v1969
        %1990 = vmatprep.subr.bf16.mxu0 0
        %1991 = vmatpush1.bf16.msra.mxu0 %v1970
        %1992 = vmatprep.subr.bf16.mxu0 0
        %1993 = vmatpush1.bf16.msra.mxu0 %v1971
        %1994 = vmatprep.subr.bf16.mxu0 0
        %1995 = vmatpush1.bf16.msra.mxu0 %v1972
        %1996 = vmatprep.subr.bf16.mxu0 0
        %1997 = vmatpush1.bf16.msra.mxu0 %v1973
        %1998 = vmatprep.subr.bf16.mxu0 0
        %1999 = vmatpush1.bf16.msra.mxu0 0
        %2000 = vmatprep.subr.bf16.mxu0 0
        %2001 = vmatpush1.bf16.msra.mxu0 0
        %2002 = vmatprep.subr.bf16.mxu0 0
        %2003 = vmatpush1.bf16.msra.mxu0 0
        %2004 = vmatprep.subr.bf16.mxu0 0
        %2005 = vmatpush1.bf16.msra.mxu0 0
        %2006 = vmatprep.subr.bf16.mxu0 0
        %2007 = vmatpush1.bf16.msra.mxu0 0
        %2008 = vmatprep.subr.bf16.mxu0 0
        %2009 = vmatpush1.bf16.msra.mxu0 0
        %2010 = vmatprep.subr.bf16.mxu0 0
        %2011 = vmatpush1.bf16.msra.mxu0 0
        %2012 = vmatprep.subr.bf16.mxu0 0
        %2013 = vmatpush1.bf16.msra.mxu0 0
        %2014 = vmatprep.mubr.bf16.mxu0 0
        %2015 = vmatmul.mubr.bf16.gmra.mrb[0].mxu0 %v1932
        %v2016 = vpop.f32.mrb[0].mxu0
        %v2017 = vadd.f32 0.0, %v2016
        %v2018 = vpop.f32.mrb[0].mxu0
        %v2019 = vpop.f32.mrb[0].mxu0
        %v2020 = vpop.f32.mrb[0].mxu0
        %2021 = vdwg.mxu0
        %v2022 = vadd.f32 %v1899, %v2017
        %v2023 = vld [vmem:[%s6] sm:$0x1]
        %v2025 = vlaneseq
        %v2026 = vshrl.u32 %v2025, 7
        %v2027 = vsub.s32 0, %v2026
        %v2028 = vrot.slane %v2023, %v2027
        %v2030 = vadd.f32 %v2022, %v2028
        %vm2031 = vcmask 253952
        %2032 = vst.msk [vmem:[%s342] sm:$0x1] %vm2031, %v2030
        %2034 = vrot.lane.b32.xlu0 %v2030, 96
        %v2035 = vpop.permute.xlu0 %2034
        %2037 = vst.msk [vmem:[%s342 + $0x1] sm:$0x1] %vm2031, %v2035
        %2038 = vrot.lane.b32.xlu0 %v2030, 64
        %v2039 = vpop.permute.xlu0 %2038
        %2041 = vst.msk [vmem:[%s342 + $0x2] sm:$0x1] %vm2031, %v2039
        %vm2042 = vcmask 254977
        %2043 = vst.msk [vmem:[%s342 + $0x2] sm:$0x2] %vm2042, %v2030
        %2044 = vst.msk [vmem:[%s342 + $0x3] sm:$0x2] %vm2042, %v2035
        %2045 = vst.msk [vmem:[%s342 + $0x4] sm:$0x2] %vm2042, %v2039
        %vm2046 = vcmask 256002
        %2047 = vst.msk [vmem:[%s342 + $0x4] sm:$0x4] %vm2046, %v2030
        %2048 = vst.msk [vmem:[%s342 + $0x5] sm:$0x4] %vm2046, %v2035
        %2049 = vst.msk [vmem:[%s342 + $0x6] sm:$0x4] %vm2046, %v2039
        %p2050 = scmp.lt.s32.totalorder %s23, 1
        %s2051 = scalar_select %p2050, %s23, 1
        %s2052 = smul.addr %s2051, 2
        %s2053 = smul.addr %s2052, 8
        %s2054 = scalar_lea.vmem %s7, %s2053
        // Predicated region
        $region65: #{forward.1} parent=47 // pred_check
          %p2055 = pneg %p193
        $region66: #{forward.1} parent=47 // pred_check_branch
          %2057 = sbr.rel (%p2055) target = $region68
        $region67: #{forward.1} parent=47 // pred_region
          _
        $region68: #{forward.1} parent=47 // pred_fallthru
          _
      $region48: #{forward.1} parent=5 // pred_fallthru
        _
      %p2058 = scmp.le.s32.totalorder 2, %s18
      // Predicated region
      $region69: #{forward.1} parent=5 // pred_check
        %p2059 = pneg %p2058
      $region70: #{forward.1} parent=5 // pred_check_branch
        %2061 = sbr.rel (%p2059) target = $region72
      $region71: #{forward.1} parent=5 // pred_region
        %s2062 = ssub.s32 %s18, 2
        // Predicated region
        $region73: #{forward.1} parent=71 // pred_check
          %p2063 = pneg %p199
        $region74: #{forward.1} parent=71 // pred_check_branch
          %2065 = sbr.rel (%p2063) target = $region76
        $region75: #{forward.1} parent=71 // pred_region
          %p2066 = scmp.lt.s32.totalorder %s24, 1
          %s2067 = scalar_select %p2066, %s24, 1
          %s2068 = smul.addr %s2067, 2
          %s2069 = smul.addr %s2068, 8
          %s2070 = scalar_lea.vmem %s7, %s2069
        $region76: #{forward.1} parent=71 // pred_fallthru
          _
      $region72: #{forward.1} parent=5 // pred_fallthru
        _
    $region6: #{forward.1} parent=1 // loop_footer
      %s22 = sadd.s32 1, %s18
    $region7: #{forward.1} parent=1 // loop_footer_branch
      %17 = sbr.rel target = $region3
    $region8: #{forward.1} parent=1 // loop_exit
      _
    %2071 = vsyncpa [#allocation6], 1
    %s2072 = scalar_lea.sflag [#allocation6], 1
    %2073 = vsyncpa %s2072, 1
    %2074 = vsyncpa [#allocation8], 1
    %2075 = vsyncpa [#allocation11], 1

</llo_original>
